<compile_context>
chip_gen: v7x
topology: tpu7x:2x2x1
jax: 0.10.0
libtpu: 0.0.40
codegen_flags: <defaults>
</compile_context>

<pallas_src>
import functools

import jax
import jax.numpy as jnp
from jax.experimental import pallas as pl
from jax.experimental.pallas import tpu as pltpu


def _topk_sum_rows(x, k):
    """Sum of the top-k values of each row of x: (L, M) -> (L, 1). Exact with ties."""
    L, M = x.shape
    col = jax.lax.broadcasted_iota(jnp.int32, (L, M), 1)
    total = jnp.zeros((L, 1), jnp.float32)
    s = x
    for _ in range(k):
        m = jnp.max(s, axis=-1, keepdims=True)                            # (L, 1)
        total = total + m
        # mask exactly one (the first) occurrence of the row max
        idx = jnp.min(jnp.where(s == m, col, M), axis=-1, keepdims=True)  # (L, 1)
        s = jnp.where(col == idx, -jnp.inf, s)
    return total


def insto_kernel(q_ref, s_ref, o_ref, *, neighbor_k):
    # q_ref: (L, C)     query descriptors of the current batch element
    # s_ref: (W, C, M)  all support classes (VMEM-resident across the grid)
    # o_ref: (1, W)     similarity row for this batch element
    q = q_ref[...].astype(jnp.float32)                                    # (L, C)
    q_inv = jax.lax.rsqrt(jnp.sum(q * q, axis=-1, keepdims=True))         # (L, 1)
    qn = q * q_inv

    n_way = s_ref.shape[0]
    for w in range(n_way):                                                # static, small
        s = s_ref[w].astype(jnp.float32)                                  # (C, M)
        s_inv = jax.lax.rsqrt(jnp.sum(s * s, axis=0, keepdims=True))      # (1, M)
        sn = s * s_inv
        cos = jnp.dot(qn, sn, preferred_element_type=jnp.float32)         # (L, M)
        tk = _topk_sum_rows(cos, neighbor_k)                              # (L, 1)
        o_ref[:, w:w + 1] = jnp.sum(tk, axis=0, keepdims=True)            # (1, 1)


def insto_class_metric(x1, x2, neighbor_k=3):
    """x1: (B, C, L) queries; x2: (W, C, M) support classes -> (B, W) similarities."""
    B, C, L = x1.shape
    W, C2, M = x2.shape
    assert C == C2

    # Single cheap layout op on the small query tensor so the in-kernel matmul is the
    # canonical (L, C) @ (C, M) contraction (no transposed-LHS / in-kernel transposes).
    x1t = jnp.transpose(x1, (0, 2, 1))                                    # (B, L, C)

    out = pl.pallas_call(
        functools.partial(insto_kernel, neighbor_k=neighbor_k),
        out_shape=jax.ShapeDtypeStruct((B, 1, W), jnp.float32),
        grid_spec=pltpu.PrefetchScalarGridSpec(
            num_scalar_prefetch=0,
            grid=(B,),
            in_specs=[
                pl.BlockSpec((None, L, C), lambda b: (b, 0, 0)),          # per-query block
                pl.BlockSpec((W, C, M), lambda b: (0, 0, 0)),             # resident support
            ],
            out_specs=pl.BlockSpec((None, 1, W), lambda b: (b, 0, 0)),
        ),
        compiler_params=pltpu.CompilerParams(
            dimension_semantics=("parallel",)),                           # queries across TCs
        # TODO(synk): for very large L*M (e.g. 441x2205 DN4 shapes) add an M-tile grid
        # axis with a running top-k, and set vmem_limit_bytes for v7x/v5e budgets.
    )(x1t, x2)
    return out.reshape(B, W)


def insto_class_metric_ref(x1, x2, neighbor_k=3):
    """Pure-JAX reference matching the PyTorch forward exactly."""
    q = jnp.transpose(x1, (0, 2, 1))                                      # (B, L, C)
    q = q / jnp.linalg.norm(q, axis=-1, keepdims=True)                    # row-normalize
    s = x2 / jnp.linalg.norm(x2, axis=1, keepdims=True)                   # col-normalize (C)
    cos = jnp.einsum('blc,wcm->bwlm', q, s)                               # (B, W, L, M)
    topk = jax.lax.top_k(cos, neighbor_k)[0]                              # (B, W, L, k)
    return jnp.sum(topk, axis=(-1, -2))                                   # (B, W)


if __name__ == "__main__":
    B, C, L = 2, 32, 64       # 2 queries, 32 channels, 8x8 = 64 local descriptors
    W, M = 4, 128             # 4-way, 128 support descriptors per class
    neighbor_k = 3

    key = jax.random.PRNGKey(0)
    k1, k2 = jax.random.split(key)
    x1 = jax.random.normal(k1, (B, C, L), dtype=jnp.float32)
    x2 = jax.random.normal(k2, (W, C, M), dtype=jnp.float32)

    out = jax.block_until_ready(insto_class_metric(x1, x2, neighbor_k))
    ref = jax.block_until_ready(insto_class_metric_ref(x1, x2, neighbor_k))

    assert out.shape == (B, W) and out.dtype == jnp.float32
    assert jnp.allclose(out, ref, atol=1e-3, rtol=1e-3), f"mismatch:\n{out}\nvs\n{ref}"
    print("KERNEL_OK")
</pallas_src>

<mosaic_0001>
module attributes {stable_mosaic.version = 11 : i64} {
  func.func @insto_kernel(%arg0: i32, %arg1: memref<1x64x32xf32, #tpu.memory_space<vmem>>, %arg2: memref<4x32x128xf32, #tpu.memory_space<vmem>>, %arg3: memref<1x1x4xf32, #tpu.memory_space<vmem>>) attributes {dimension_semantics = [#tpu.dimension_semantics<parallel>], iteration_bounds = array<i64: 2>, scalar_prefetch = 0 : i64, scratch_operands = 0 : i64, tpu.core_type = #tpu.core_type<tc>, window_params = [{transform_indices = @transform_0, window_bounds = array<i64: 1, 64, 32>}, {pipeline_mode = #tpu.pipeline_mode<synchronous>, transform_indices = @transform_1, window_bounds = array<i64: 4, 32, 128>}, {transform_indices = @transform_2, window_bounds = array<i64: 1, 1, 4>}]} {
    %c0 = arith.constant 0 : index
    %c0_0 = arith.constant 0 : index
    %c0_1 = arith.constant 0 : index
    %0 = vector.load %arg1[%c0, %c0_0, %c0_1] : memref<1x64x32xf32, #tpu.memory_space<vmem>>, vector<1x64x32xf32>
    %1 = vector.shape_cast %0 : vector<1x64x32xf32> to vector<64x32xf32>
    %2 = arith.mulf %1, %1 : vector<64x32xf32>
    %cst = arith.constant dense<0.000000e+00> : vector<64xf32>
    %3 = vector.multi_reduction <add>, %2, %cst [1] : vector<64x32xf32> to vector<64xf32>
    %4 = vector.shape_cast %3 : vector<64xf32> to vector<64x1xf32>
    %5 = math.rsqrt %4 : vector<64x1xf32>
    %6 = vector.broadcast %5 : vector<64x1xf32> to vector<64x32xf32>
    %7 = arith.mulf %1, %6 : vector<64x32xf32>
    %c0_2 = arith.constant 0 : index
    %c0_3 = arith.constant 0 : index
    %c0_4 = arith.constant 0 : index
    %8 = vector.load %arg2[%c0_2, %c0_3, %c0_4] : memref<4x32x128xf32, #tpu.memory_space<vmem>>, vector<1x32x128xf32>
    %9 = vector.shape_cast %8 : vector<1x32x128xf32> to vector<32x128xf32>
    %10 = arith.mulf %9, %9 : vector<32x128xf32>
    %cst_5 = arith.constant dense<0.000000e+00> : vector<128xf32>
    %11 = vector.multi_reduction <add>, %10, %cst_5 [0] : vector<32x128xf32> to vector<128xf32>
    %12 = vector.shape_cast %11 : vector<128xf32> to vector<1x128xf32>
    %13 = math.rsqrt %12 : vector<1x128xf32>
    %14 = vector.broadcast %13 : vector<1x128xf32> to vector<32x128xf32>
    %15 = arith.mulf %9, %14 : vector<32x128xf32>
    %cst_6 = arith.constant dense<0.000000e+00> : vector<64x128xf32>
    %16 = tpu.matmul %7, %15, %cst_6 {dimension_numbers = #tpu.dot_dimension_numbers<[1], [0], [0], [1], [0, 0, 1, 1], [], []>} : vector<64x32xf32>, vector<32x128xf32>, vector<64x128xf32> -> vector<64x128xf32>
    %17 = tpu.iota {dimensions = array<i32: 1>} : vector<64x128xi32>
    %cst_7 = arith.constant 0.000000e+00 : f32
    %18 = vector.broadcast %cst_7 : f32 to vector<64x1xf32>
    %cst_8 = arith.constant dense<0xFF800000> : vector<64xf32>
    %19 = vector.multi_reduction <maximumf>, %16, %cst_8 [1] : vector<64x128xf32> to vector<64xf32>
    %20 = vector.shape_cast %19 : vector<64xf32> to vector<64x1xf32>
    %21 = arith.addf %18, %20 : vector<64x1xf32>
    %22 = vector.broadcast %20 : vector<64x1xf32> to vector<64x128xf32>
    %23 = arith.cmpf oeq, %16, %22 : vector<64x128xf32>
    %c128_i32 = arith.constant 128 : i32
    %24 = vector.broadcast %c128_i32 : i32 to vector<64x128xi32>
    %25 = arith.select %23, %17, %24 : vector<64x128xi1>, vector<64x128xi32>
    %cst_9 = arith.constant dense<2147483647> : vector<64xi32>
    %26 = vector.multi_reduction <minsi>, %25, %cst_9 [1] : vector<64x128xi32> to vector<64xi32>
    %27 = vector.shape_cast %26 : vector<64xi32> to vector<64x1xi32>
    %28 = vector.broadcast %27 : vector<64x1xi32> to vector<64x128xi32>
    %29 = arith.cmpi eq, %17, %28 : vector<64x128xi32>
    %cst_10 = arith.constant 0xFF800000 : f32
    %30 = vector.broadcast %cst_10 : f32 to vector<64x128xf32>
    %31 = arith.select %29, %30, %16 : vector<64x128xi1>, vector<64x128xf32>
    %cst_11 = arith.constant dense<0xFF800000> : vector<64xf32>
    %32 = vector.multi_reduction <maximumf>, %31, %cst_11 [1] : vector<64x128xf32> to vector<64xf32>
    %33 = vector.shape_cast %32 : vector<64xf32> to vector<64x1xf32>
    %34 = arith.addf %21, %33 : vector<64x1xf32>
    %35 = vector.broadcast %33 : vector<64x1xf32> to vector<64x128xf32>
    %36 = arith.cmpf oeq, %31, %35 : vector<64x128xf32>
    %c128_i32_12 = arith.constant 128 : i32
    %37 = vector.broadcast %c128_i32_12 : i32 to vector<64x128xi32>
    %38 = arith.select %36, %17, %37 : vector<64x128xi1>, vector<64x128xi32>
    %cst_13 = arith.constant dense<2147483647> : vector<64xi32>
    %39 = vector.multi_reduction <minsi>, %38, %cst_13 [1] : vector<64x128xi32> to vector<64xi32>
    %40 = vector.shape_cast %39 : vector<64xi32> to vector<64x1xi32>
    %41 = vector.broadcast %40 : vector<64x1xi32> to vector<64x128xi32>
    %42 = arith.cmpi eq, %17, %41 : vector<64x128xi32>
    %cst_14 = arith.constant 0xFF800000 : f32
    %43 = vector.broadcast %cst_14 : f32 to vector<64x128xf32>
    %44 = arith.select %42, %43, %31 : vector<64x128xi1>, vector<64x128xf32>
    %cst_15 = arith.constant dense<0xFF800000> : vector<64xf32>
    %45 = vector.multi_reduction <maximumf>, %44, %cst_15 [1] : vector<64x128xf32> to vector<64xf32>
    %46 = vector.shape_cast %45 : vector<64xf32> to vector<64x1xf32>
    %47 = arith.addf %34, %46 : vector<64x1xf32>
    %cst_16 = arith.constant dense<0.000000e+00> : vector<1xf32>
    %48 = vector.multi_reduction <add>, %47, %cst_16 [0] : vector<64x1xf32> to vector<1xf32>
    %49 = vector.shape_cast %48 : vector<1xf32> to vector<1x1xf32>
    %c0_17 = arith.constant 0 : index
    %c0_18 = arith.constant 0 : index
    %c0_19 = arith.constant 0 : index
    %50 = vector.load %arg3[%c0_17, %c0_18, %c0_19] : memref<1x1x4xf32, #tpu.memory_space<vmem>>, vector<1x1x1xf32>
    %51 = vector.shape_cast %50 : vector<1x1x1xf32> to vector<1x1xf32>
    %52 = vector.shape_cast %49 : vector<1x1xf32> to vector<1x1x1xf32>
    tpu.vector_store %arg3[%c0_17, %c0_18, %c0_19], %52 {strides = array<i32>} : memref<1x1x4xf32, #tpu.memory_space<vmem>>, vector<1x1x1xf32>,
    %c1 = arith.constant 1 : index
    %c0_20 = arith.constant 0 : index
    %c0_21 = arith.constant 0 : index
    %53 = vector.load %arg2[%c1, %c0_20, %c0_21] : memref<4x32x128xf32, #tpu.memory_space<vmem>>, vector<1x32x128xf32>
    %54 = vector.shape_cast %53 : vector<1x32x128xf32> to vector<32x128xf32>
    %55 = arith.mulf %54, %54 : vector<32x128xf32>
    %cst_22 = arith.constant dense<0.000000e+00> : vector<128xf32>
    %56 = vector.multi_reduction <add>, %55, %cst_22 [0] : vector<32x128xf32> to vector<128xf32>
    %57 = vector.shape_cast %56 : vector<128xf32> to vector<1x128xf32>
    %58 = math.rsqrt %57 : vector<1x128xf32>
    %59 = vector.broadcast %58 : vector<1x128xf32> to vector<32x128xf32>
    %60 = arith.mulf %54, %59 : vector<32x128xf32>
    %cst_23 = arith.constant dense<0.000000e+00> : vector<64x128xf32>
    %61 = tpu.matmul %7, %60, %cst_23 {dimension_numbers = #tpu.dot_dimension_numbers<[1], [0], [0], [1], [0, 0, 1, 1], [], []>} : vector<64x32xf32>, vector<32x128xf32>, vector<64x128xf32> -> vector<64x128xf32>
    %62 = tpu.iota {dimensions = array<i32: 1>} : vector<64x128xi32>
    %cst_24 = arith.constant 0.000000e+00 : f32
    %63 = vector.broadcast %cst_24 : f32 to vector<64x1xf32>
    %cst_25 = arith.constant dense<0xFF800000> : vector<64xf32>
    %64 = vector.multi_reduction <maximumf>, %61, %cst_25 [1] : vector<64x128xf32> to vector<64xf32>
    %65 = vector.shape_cast %64 : vector<64xf32> to vector<64x1xf32>
    %66 = arith.addf %63, %65 : vector<64x1xf32>
    %67 = vector.broadcast %65 : vector<64x1xf32> to vector<64x128xf32>
    %68 = arith.cmpf oeq, %61, %67 : vector<64x128xf32>
    %c128_i32_26 = arith.constant 128 : i32
    %69 = vector.broadcast %c128_i32_26 : i32 to vector<64x128xi32>
    %70 = arith.select %68, %62, %69 : vector<64x128xi1>, vector<64x128xi32>
    %cst_27 = arith.constant dense<2147483647> : vector<64xi32>
    %71 = vector.multi_reduction <minsi>, %70, %cst_27 [1] : vector<64x128xi32> to vector<64xi32>
    %72 = vector.shape_cast %71 : vector<64xi32> to vector<64x1xi32>
    %73 = vector.broadcast %72 : vector<64x1xi32> to vector<64x128xi32>
    %74 = arith.cmpi eq, %62, %73 : vector<64x128xi32>
    %cst_28 = arith.constant 0xFF800000 : f32
    %75 = vector.broadcast %cst_28 : f32 to vector<64x128xf32>
    %76 = arith.select %74, %75, %61 : vector<64x128xi1>, vector<64x128xf32>
    %cst_29 = arith.constant dense<0xFF800000> : vector<64xf32>
    %77 = vector.multi_reduction <maximumf>, %76, %cst_29 [1] : vector<64x128xf32> to vector<64xf32>
    %78 = vector.shape_cast %77 : vector<64xf32> to vector<64x1xf32>
    %79 = arith.addf %66, %78 : vector<64x1xf32>
    %80 = vector.broadcast %78 : vector<64x1xf32> to vector<64x128xf32>
    %81 = arith.cmpf oeq, %76, %80 : vector<64x128xf32>
    %c128_i32_30 = arith.constant 128 : i32
    %82 = vector.broadcast %c128_i32_30 : i32 to vector<64x128xi32>
    %83 = arith.select %81, %62, %82 : vector<64x128xi1>, vector<64x128xi32>
    %cst_31 = arith.constant dense<2147483647> : vector<64xi32>
    %84 = vector.multi_reduction <minsi>, %83, %cst_31 [1] : vector<64x128xi32> to vector<64xi32>
    %85 = vector.shape_cast %84 : vector<64xi32> to vector<64x1xi32>
    %86 = vector.broadcast %85 : vector<64x1xi32> to vector<64x128xi32>
    %87 = arith.cmpi eq, %62, %86 : vector<64x128xi32>
    %cst_32 = arith.constant 0xFF800000 : f32
    %88 = vector.broadcast %cst_32 : f32 to vector<64x128xf32>
    %89 = arith.select %87, %88, %76 : vector<64x128xi1>, vector<64x128xf32>
    %cst_33 = arith.constant dense<0xFF800000> : vector<64xf32>
    %90 = vector.multi_reduction <maximumf>, %89, %cst_33 [1] : vector<64x128xf32> to vector<64xf32>
    %91 = vector.shape_cast %90 : vector<64xf32> to vector<64x1xf32>
    %92 = arith.addf %79, %91 : vector<64x1xf32>
    %cst_34 = arith.constant dense<0.000000e+00> : vector<1xf32>
    %93 = vector.multi_reduction <add>, %92, %cst_34 [0] : vector<64x1xf32> to vector<1xf32>
    %94 = vector.shape_cast %93 : vector<1xf32> to vector<1x1xf32>
    %c0_35 = arith.constant 0 : index
    %c0_36 = arith.constant 0 : index
    %c1_37 = arith.constant 1 : index
    %95 = vector.load %arg3[%c0_35, %c0_36, %c1_37] : memref<1x1x4xf32, #tpu.memory_space<vmem>>, vector<1x1x1xf32>
    %96 = vector.shape_cast %95 : vector<1x1x1xf32> to vector<1x1xf32>
    %97 = vector.shape_cast %94 : vector<1x1xf32> to vector<1x1x1xf32>
    tpu.vector_store %arg3[%c0_35, %c0_36, %c1_37], %97 {strides = array<i32>} : memref<1x1x4xf32, #tpu.memory_space<vmem>>, vector<1x1x1xf32>,
    %c2 = arith.constant 2 : index
    %c0_38 = arith.constant 0 : index
    %c0_39 = arith.constant 0 : index
    %98 = vector.load %arg2[%c2, %c0_38, %c0_39] : memref<4x32x128xf32, #tpu.memory_space<vmem>>, vector<1x32x128xf32>
    %99 = vector.shape_cast %98 : vector<1x32x128xf32> to vector<32x128xf32>
    %100 = arith.mulf %99, %99 : vector<32x128xf32>
    %cst_40 = arith.constant dense<0.000000e+00> : vector<128xf32>
    %101 = vector.multi_reduction <add>, %100, %cst_40 [0] : vector<32x128xf32> to vector<128xf32>
    %102 = vector.shape_cast %101 : vector<128xf32> to vector<1x128xf32>
    %103 = math.rsqrt %102 : vector<1x128xf32>
    %104 = vector.broadcast %103 : vector<1x128xf32> to vector<32x128xf32>
    %105 = arith.mulf %99, %104 : vector<32x128xf32>
    %cst_41 = arith.constant dense<0.000000e+00> : vector<64x128xf32>
    %106 = tpu.matmul %7, %105, %cst_41 {dimension_numbers = #tpu.dot_dimension_numbers<[1], [0], [0], [1], [0, 0, 1, 1], [], []>} : vector<64x32xf32>, vector<32x128xf32>, vector<64x128xf32> -> vector<64x128xf32>
    %107 = tpu.iota {dimensions = array<i32: 1>} : vector<64x128xi32>
    %cst_42 = arith.constant 0.000000e+00 : f32
    %108 = vector.broadcast %cst_42 : f32 to vector<64x1xf32>
    %cst_43 = arith.constant dense<0xFF800000> : vector<64xf32>
    %109 = vector.multi_reduction <maximumf>, %106, %cst_43 [1] : vector<64x128xf32> to vector<64xf32>
    %110 = vector.shape_cast %109 : vector<64xf32> to vector<64x1xf32>
    %111 = arith.addf %108, %110 : vector<64x1xf32>
    %112 = vector.broadcast %110 : vector<64x1xf32> to vector<64x128xf32>
    %113 = arith.cmpf oeq, %106, %112 : vector<64x128xf32>
    %c128_i32_44 = arith.constant 128 : i32
    %114 = vector.broadcast %c128_i32_44 : i32 to vector<64x128xi32>
    %115 = arith.select %113, %107, %114 : vector<64x128xi1>, vector<64x128xi32>
    %cst_45 = arith.constant dense<2147483647> : vector<64xi32>
    %116 = vector.multi_reduction <minsi>, %115, %cst_45 [1] : vector<64x128xi32> to vector<64xi32>
    %117 = vector.shape_cast %116 : vector<64xi32> to vector<64x1xi32>
    %118 = vector.broadcast %117 : vector<64x1xi32> to vector<64x128xi32>
    %119 = arith.cmpi eq, %107, %118 : vector<64x128xi32>
    %cst_46 = arith.constant 0xFF800000 : f32
    %120 = vector.broadcast %cst_46 : f32 to vector<64x128xf32>
    %121 = arith.select %119, %120, %106 : vector<64x128xi1>, vector<64x128xf32>
    %cst_47 = arith.constant dense<0xFF800000> : vector<64xf32>
    %122 = vector.multi_reduction <maximumf>, %121, %cst_47 [1] : vector<64x128xf32> to vector<64xf32>
    %123 = vector.shape_cast %122 : vector<64xf32> to vector<64x1xf32>
    %124 = arith.addf %111, %123 : vector<64x1xf32>
    %125 = vector.broadcast %123 : vector<64x1xf32> to vector<64x128xf32>
    %126 = arith.cmpf oeq, %121, %125 : vector<64x128xf32>
    %c128_i32_48 = arith.constant 128 : i32
    %127 = vector.broadcast %c128_i32_48 : i32 to vector<64x128xi32>
    %128 = arith.select %126, %107, %127 : vector<64x128xi1>, vector<64x128xi32>
    %cst_49 = arith.constant dense<2147483647> : vector<64xi32>
    %129 = vector.multi_reduction <minsi>, %128, %cst_49 [1] : vector<64x128xi32> to vector<64xi32>
    %130 = vector.shape_cast %129 : vector<64xi32> to vector<64x1xi32>
    %131 = vector.broadcast %130 : vector<64x1xi32> to vector<64x128xi32>
    %132 = arith.cmpi eq, %107, %131 : vector<64x128xi32>
    %cst_50 = arith.constant 0xFF800000 : f32
    %133 = vector.broadcast %cst_50 : f32 to vector<64x128xf32>
    %134 = arith.select %132, %133, %121 : vector<64x128xi1>, vector<64x128xf32>
    %cst_51 = arith.constant dense<0xFF800000> : vector<64xf32>
    %135 = vector.multi_reduction <maximumf>, %134, %cst_51 [1] : vector<64x128xf32> to vector<64xf32>
    %136 = vector.shape_cast %135 : vector<64xf32> to vector<64x1xf32>
    %137 = arith.addf %124, %136 : vector<64x1xf32>
    %cst_52 = arith.constant dense<0.000000e+00> : vector<1xf32>
    %138 = vector.multi_reduction <add>, %137, %cst_52 [0] : vector<64x1xf32> to vector<1xf32>
    %139 = vector.shape_cast %138 : vector<1xf32> to vector<1x1xf32>
    %c0_53 = arith.constant 0 : index
    %c0_54 = arith.constant 0 : index
    %c2_55 = arith.constant 2 : index
    %140 = vector.load %arg3[%c0_53, %c0_54, %c2_55] : memref<1x1x4xf32, #tpu.memory_space<vmem>>, vector<1x1x1xf32>
    %141 = vector.shape_cast %140 : vector<1x1x1xf32> to vector<1x1xf32>
    %142 = vector.shape_cast %139 : vector<1x1xf32> to vector<1x1x1xf32>
    tpu.vector_store %arg3[%c0_53, %c0_54, %c2_55], %142 {strides = array<i32>} : memref<1x1x4xf32, #tpu.memory_space<vmem>>, vector<1x1x1xf32>,
    %c3 = arith.constant 3 : index
    %c0_56 = arith.constant 0 : index
    %c0_57 = arith.constant 0 : index
    %143 = vector.load %arg2[%c3, %c0_56, %c0_57] : memref<4x32x128xf32, #tpu.memory_space<vmem>>, vector<1x32x128xf32>
    %144 = vector.shape_cast %143 : vector<1x32x128xf32> to vector<32x128xf32>
    %145 = arith.mulf %144, %144 : vector<32x128xf32>
    %cst_58 = arith.constant dense<0.000000e+00> : vector<128xf32>
    %146 = vector.multi_reduction <add>, %145, %cst_58 [0] : vector<32x128xf32> to vector<128xf32>
    %147 = vector.shape_cast %146 : vector<128xf32> to vector<1x128xf32>
    %148 = math.rsqrt %147 : vector<1x128xf32>
    %149 = vector.broadcast %148 : vector<1x128xf32> to vector<32x128xf32>
    %150 = arith.mulf %144, %149 : vector<32x128xf32>
    %cst_59 = arith.constant dense<0.000000e+00> : vector<64x128xf32>
    %151 = tpu.matmul %7, %150, %cst_59 {dimension_numbers = #tpu.dot_dimension_numbers<[1], [0], [0], [1], [0, 0, 1, 1], [], []>} : vector<64x32xf32>, vector<32x128xf32>, vector<64x128xf32> -> vector<64x128xf32>
    %152 = tpu.iota {dimensions = array<i32: 1>} : vector<64x128xi32>
    %cst_60 = arith.constant 0.000000e+00 : f32
    %153 = vector.broadcast %cst_60 : f32 to vector<64x1xf32>
    %cst_61 = arith.constant dense<0xFF800000> : vector<64xf32>
    %154 = vector.multi_reduction <maximumf>, %151, %cst_61 [1] : vector<64x128xf32> to vector<64xf32>
    %155 = vector.shape_cast %154 : vector<64xf32> to vector<64x1xf32>
    %156 = arith.addf %153, %155 : vector<64x1xf32>
    %157 = vector.broadcast %155 : vector<64x1xf32> to vector<64x128xf32>
    %158 = arith.cmpf oeq, %151, %157 : vector<64x128xf32>
    %c128_i32_62 = arith.constant 128 : i32
    %159 = vector.broadcast %c128_i32_62 : i32 to vector<64x128xi32>
    %160 = arith.select %158, %152, %159 : vector<64x128xi1>, vector<64x128xi32>
    %cst_63 = arith.constant dense<2147483647> : vector<64xi32>
    %161 = vector.multi_reduction <minsi>, %160, %cst_63 [1] : vector<64x128xi32> to vector<64xi32>
    %162 = vector.shape_cast %161 : vector<64xi32> to vector<64x1xi32>
    %163 = vector.broadcast %162 : vector<64x1xi32> to vector<64x128xi32>
    %164 = arith.cmpi eq, %152, %163 : vector<64x128xi32>
    %cst_64 = arith.constant 0xFF800000 : f32
    %165 = vector.broadcast %cst_64 : f32 to vector<64x128xf32>
    %166 = arith.select %164, %165, %151 : vector<64x128xi1>, vector<64x128xf32>
    %cst_65 = arith.constant dense<0xFF800000> : vector<64xf32>
    %167 = vector.multi_reduction <maximumf>, %166, %cst_65 [1] : vector<64x128xf32> to vector<64xf32>
    %168 = vector.shape_cast %167 : vector<64xf32> to vector<64x1xf32>
    %169 = arith.addf %156, %168 : vector<64x1xf32>
    %170 = vector.broadcast %168 : vector<64x1xf32> to vector<64x128xf32>
    %171 = arith.cmpf oeq, %166, %170 : vector<64x128xf32>
    %c128_i32_66 = arith.constant 128 : i32
    %172 = vector.broadcast %c128_i32_66 : i32 to vector<64x128xi32>
    %173 = arith.select %171, %152, %172 : vector<64x128xi1>, vector<64x128xi32>
    %cst_67 = arith.constant dense<2147483647> : vector<64xi32>
    %174 = vector.multi_reduction <minsi>, %173, %cst_67 [1] : vector<64x128xi32> to vector<64xi32>
    %175 = vector.shape_cast %174 : vector<64xi32> to vector<64x1xi32>
    %176 = vector.broadcast %175 : vector<64x1xi32> to vector<64x128xi32>
    %177 = arith.cmpi eq, %152, %176 : vector<64x128xi32>
    %cst_68 = arith.constant 0xFF800000 : f32
    %178 = vector.broadcast %cst_68 : f32 to vector<64x128xf32>
    %179 = arith.select %177, %178, %166 : vector<64x128xi1>, vector<64x128xf32>
    %cst_69 = arith.constant dense<0xFF800000> : vector<64xf32>
    %180 = vector.multi_reduction <maximumf>, %179, %cst_69 [1] : vector<64x128xf32> to vector<64xf32>
    %181 = vector.shape_cast %180 : vector<64xf32> to vector<64x1xf32>
    %182 = arith.addf %169, %181 : vector<64x1xf32>
    %cst_70 = arith.constant dense<0.000000e+00> : vector<1xf32>
    %183 = vector.multi_reduction <add>, %182, %cst_70 [0] : vector<64x1xf32> to vector<1xf32>
    %184 = vector.shape_cast %183 : vector<1xf32> to vector<1x1xf32>
    %c0_71 = arith.constant 0 : index
    %c0_72 = arith.constant 0 : index
    %c3_73 = arith.constant 3 : index
    %185 = vector.load %arg3[%c0_71, %c0_72, %c3_73] : memref<1x1x4xf32, #tpu.memory_space<vmem>>, vector<1x1x1xf32>
    %186 = vector.shape_cast %185 : vector<1x1x1xf32> to vector<1x1xf32>
    %187 = vector.shape_cast %184 : vector<1x1xf32> to vector<1x1x1xf32>
    tpu.vector_store %arg3[%c0_71, %c0_72, %c3_73], %187 {strides = array<i32>} : memref<1x1x4xf32, #tpu.memory_space<vmem>>, vector<1x1x1xf32>,
    return
  }
  func.func @transform_0(%arg0: i32) -> (i32, i32, i32) {
    %c0_i32 = arith.constant 0 : i32
    %c0_i32_0 = arith.constant 0 : i32
    %c0_i32_1 = arith.constant 0 : i32
    return %arg0, %c0_i32, %c0_i32_0 : i32, i32, i32
  }
  func.func @transform_1(%arg0: i32) -> (i32, i32, i32) {
    %c0_i32 = arith.constant 0 : i32
    %c0_i32_0 = arith.constant 0 : i32
    %c0_i32_1 = arith.constant 0 : i32
    %c0_i32_2 = arith.constant 0 : i32
    return %c0_i32, %c0_i32_0, %c0_i32_1 : i32, i32, i32
  }
  func.func @transform_2(%arg0: i32) -> (i32, i32, i32) {
    %c0_i32 = arith.constant 0 : i32
    %c0_i32_0 = arith.constant 0 : i32
    %c0_i32_1 = arith.constant 0 : i32
    return %arg0, %c0_i32, %c0_i32_0 : i32, i32, i32
  }
}

</mosaic_0001>

<llo_original>
// kernel: tpu_custom_call.1
$region0: #{tpu_custom_call.1}
  #allocation0 [shape = 'u32[]', space=smem, size = 0x4, offset = 0x4, fixed_abs, tag = 'smem constant byte address 0x4 - core index']
  #allocation1 [shape = 'u32[144,128]{1,0:T(1,128)}', space=vmem, size = 0x12000, scoped, tag = 'internal scratch']
  %s0 = inlined_call_operand.vmem [shape: f32[2,64,32], index: 0, kind: input, shape index: {}]
  %s1 = inlined_call_operand.vmem [shape: f32[4,32,128], index: 1, kind: input, shape index: {}]
  %s2 = inlined_call_operand.hbm [shape: f32[2,1,4], index: 2, kind: output, shape index: {}]
  %s3 = sld [smem:[#allocation0]]
  $region41: #{tpu_custom_call.1} parent=0
    _
  %s5 = ssub.s32 1, %s3
  %s6 = scalar_select 0, %s5, %s3
  $region1: #{tpu_custom_call.1} parent=0
    #allocation2 [shape = 'u8[1024]{0}', space=vmem, size = 0x400, scoped, tag = 'output window, operand 0']
    #allocation3 [shape = 's32[2]{0}', space=sflag, size = 0x8, scoped, tag = 'scoped memory for tpu_custom_call.1']
    %7 = vsyncpa [#allocation3], 0
    %s8 = scalar_lea.sflag [#allocation3], 1
    %9 = vsyncpa %s8, 0
    loop: start=0, step=1, limit=4
    $region2: #{tpu_custom_call.1} parent=1 // loop_pre_header
      _
    $region3: #{tpu_custom_call.1} parent=1 // loop_header
      %s11 = sphi 0, %s15
      %p12 = scmp.ge.s32.totalorder %s11, 4
      %s21 = sphi 0, %s23
      %s24 = sphi 0, %s21
      %s25 = sphi 0, %s24
      %s41 = sphi 0, %s25
      %s45 = sphi 0, %s45
      %s47 = sphi 0, %s45
      %s48 = sphi 0, %s47
      %s62 = sphi 0, %s48
      %s68 = sphi 0, %s70
      %s71 = sphi 0, %s68
      %s72 = sphi 0, %s71
      %s88 = sphi 0, %s72
    $region4: #{tpu_custom_call.1} parent=1 // loop_header_branch
      %14 = sbr.rel (%p12) target = $region8
    $region5: #{tpu_custom_call.1} parent=1 // loop_body
      %s16 = ssub.s32 %s11, 1
      %s17 = ssub.s32 %s11, 2
      %s18 = sadd.s32 %s11, 1
      %s19 = ssub.s32 %s11, %s18
      %p20 = scmp.eq.s32.totalorder %s19, 0
      %s22 = sadd.s32 %s21, 1
      %s23 = scalar_select %p20, %s21, %s22
      %p26 = pneg %p20
      %p27 = scmp.eq.s32.totalorder %s11, 1
      %p28 = por %p26, %p27
      %p29 = scmp.ne.s32.totalorder %s21, %s24
      %p30 = scmp.eq.s32.totalorder %s11, 0
      %p31 = por %p29, %p30
      %p32 = scmp.ne.s32.totalorder %s21, %s24
      %p33 = scmp.eq.s32.totalorder %s16, 1
      %p34 = por %p32, %p33
      %p35 = scmp.ne.s32.totalorder %s24, %s25
      %p36 = scmp.eq.s32.totalorder %s16, 0
      %p37 = por %p35, %p36
      %p38 = scmp.ne.s32.totalorder %s24, %s25
      %p39 = scmp.eq.s32.totalorder %s17, 1
      %p40 = por %p38, %p39
      %p42 = scmp.ne.s32.totalorder %s25, %s41
      %p43 = scmp.eq.s32.totalorder %s17, 0
      %p44 = por %p42, %p43
      %s46 = sadd.s32 %s45, 1
      %p49 = scmp.eq.s32.totalorder %s11, 1
      %p50 = scmp.ne.s32.totalorder %s45, %s47
      %p51 = scmp.eq.s32.totalorder %s11, 0
      %p52 = por %p50, %p51
      %p53 = scmp.ne.s32.totalorder %s45, %s47
      %p54 = scmp.eq.s32.totalorder %s16, 1
      %p55 = por %p53, %p54
      %p56 = scmp.ne.s32.totalorder %s47, %s48
      %p57 = scmp.eq.s32.totalorder %s16, 0
      %p58 = por %p56, %p57
      %p59 = scmp.ne.s32.totalorder %s47, %s48
      %p60 = scmp.eq.s32.totalorder %s17, 1
      %p61 = por %p59, %p60
      %p63 = scmp.ne.s32.totalorder %s48, %s62
      %p64 = scmp.eq.s32.totalorder %s17, 0
      %p65 = por %p63, %p64
      %s66 = ssub.s32 %s11, %s18
      %p67 = scmp.eq.s32.totalorder %s66, 0
      %s69 = sadd.s32 %s68, 1
      %s70 = scalar_select %p67, %s68, %s69
      %p73 = pneg %p67
      %p74 = scmp.eq.s32.totalorder %s11, 1
      %p75 = por %p73, %p74
      %p76 = scmp.ne.s32.totalorder %s68, %s71
      %p77 = scmp.eq.s32.totalorder %s11, 0
      %p78 = por %p76, %p77
      %p79 = scmp.ne.s32.totalorder %s68, %s71
      %p80 = scmp.eq.s32.totalorder %s16, 1
      %p81 = por %p79, %p80
      %p82 = scmp.ne.s32.totalorder %s71, %s72
      %p83 = scmp.eq.s32.totalorder %s16, 0
      %p84 = por %p82, %p83
      %p85 = scmp.ne.s32.totalorder %s71, %s72
      %p86 = scmp.eq.s32.totalorder %s17, 1
      %p87 = por %p85, %p86
      %p89 = scmp.ne.s32.totalorder %s72, %s88
      %p90 = scmp.eq.s32.totalorder %s17, 0
      %p91 = por %p89, %p90
      %p92 = scmp.le.s32.totalorder 1, %s11
      %p93 = scmp.lt.s32.totalorder %s11, 3
      %p94 = pnand %p92, %p93
      %p95 = pneg %p94
      // Predicated region
      $region9: #{tpu_custom_call.1} parent=5 // pred_check
        _
      $region10: #{tpu_custom_call.1} parent=5 // pred_check_branch
        %97 = sbr.rel (%p94) target = $region12
      $region11: #{tpu_custom_call.1} parent=5 // pred_region
        %s98 = ssub.s32 %s11, 1
        // Predicated region
        $region13: #{tpu_custom_call.1} parent=11 // pred_check
          %p99 = pneg %p58
        $region14: #{tpu_custom_call.1} parent=11 // pred_check_branch
          %101 = sbr.rel (%p99) target = $region16
        $region15: #{tpu_custom_call.1} parent=11 // pred_region
          _
        $region16: #{tpu_custom_call.1} parent=11 // pred_fallthru
          _
      $region12: #{tpu_custom_call.1} parent=5 // pred_fallthru
        _
      %p102 = scmp.lt.s32.totalorder %s11, 2
      // Predicated region
      $region17: #{tpu_custom_call.1} parent=5 // pred_check
        %p103 = pneg %p102
      $region18: #{tpu_custom_call.1} parent=5 // pred_check_branch
        %105 = sbr.rel (%p103) target = $region20
      $region19: #{tpu_custom_call.1} parent=5 // pred_region
        // Predicated region
        $region21: #{tpu_custom_call.1} parent=19 // pred_check
          %p106 = pneg %p31
        $region22: #{tpu_custom_call.1} parent=19 // pred_check_branch
          %108 = sbr.rel (%p106) target = $region24
        $region23: #{tpu_custom_call.1} parent=19 // pred_region
          %p109 = scmp.lt.s32.totalorder %s11, 1
          %s110 = scalar_select %p109, %s11, 1
          %s111 = smul.addr %s110, 8
          %s112 = smul.addr %s111, 8
          %s113 = scalar_lea.vmem %s0, %s112
        $region24: #{tpu_custom_call.1} parent=19 // pred_fallthru
          _
      $region20: #{tpu_custom_call.1} parent=5 // pred_fallthru
        _
      %p114 = scmp.le.s32.totalorder 1, %s11
      %p115 = scmp.lt.s32.totalorder %s11, 3
      %p116 = pnand %p114, %p115
      %p117 = pneg %p116
      // Predicated region
      $region25: #{tpu_custom_call.1} parent=5 // pred_check
        _
      $region26: #{tpu_custom_call.1} parent=5 // pred_check_branch
        %119 = sbr.rel (%p116) target = $region28
      $region27: #{tpu_custom_call.1} parent=5 // pred_region
        %s120 = ssub.s32 %s11, 1
        %p121 = scmp.lt.s32.totalorder %s16, 1
        %s122 = scalar_select %p121, %s16, 1
        %s123 = smul.addr %s122, 8
        %s124 = smul.addr %s123, 8
        %s125 = scalar_lea.vmem %s0, %s124
        %p126 = pneg %p37
        %p127 = pneg %p34
        %p128 = pneg %p58
        %p129 = pneg %p55
        %p130 = pneg %p84
        %p131 = pneg %p81
        %s132 = sand.u32 %s71, 1
        %s133 = scalar_lea.sflag [#allocation3], %s132
        %s134 = sand.u32 %s71, 1
        %s135 = scalar_lea.vmem [#allocation2], %s134
        %p136 = scmp.lt.s32.totalorder %s16, 1
        %s137 = scalar_select %p136, %s16, 1
        %s138 = smul.addr %s137, 8
        %s139 = smul.addr %s138, 8
        %s140 = scalar_lea.vmem %s0, %s139
        %v141 = vld [vmem:[%s140] sm:$0xff]
        %v142 = vld [vmem:[%s140 + $0x8] sm:$0xff]
        %v143 = vld [vmem:[%s140 + $0x10] sm:$0xff]
        %v144 = vld [vmem:[%s140 + $0x18] sm:$0xff]
        %v145 = vld [vmem:[%s140 + $0x20] sm:$0xff]
        %v146 = vld [vmem:[%s140 + $0x28] sm:$0xff]
        %v147 = vld [vmem:[%s140 + $0x30] sm:$0xff]
        %v148 = vld [vmem:[%s140 + $0x38] sm:$0xff]
        %v149 = vmul.f32 %v141, %v141
        %v150 = vmul.f32 %v142, %v142
        %v151 = vmul.f32 %v143, %v143
        %v152 = vmul.f32 %v144, %v144
        %v153 = vmul.f32 %v145, %v145
        %v154 = vmul.f32 %v146, %v146
        %v155 = vmul.f32 %v147, %v147
        %v156 = vmul.f32 %v148, %v148
        %vm157 = vcmask 261120
        %v158 = vsel %vm157, %v149, 0.0
        %159 = vadd.xlane.f32.xlu0 %v158
        %v160 = vpop.xlane.xlu0 %159
        %v161 = vsel %vm157, %v150, 0.0
        %162 = vadd.xlane.f32.xlu0 %v161
        %v163 = vpop.xlane.xlu0 %162
        %v164 = vsel %vm157, %v151, 0.0
        %165 = vadd.xlane.f32.xlu0 %v164
        %v166 = vpop.xlane.xlu0 %165
        %v167 = vsel %vm157, %v152, 0.0
        %168 = vadd.xlane.f32.xlu0 %v167
        %v169 = vpop.xlane.xlu0 %168
        %v170 = vsel %vm157, %v153, 0.0
        %171 = vadd.xlane.f32.xlu0 %v170
        %v172 = vpop.xlane.xlu0 %171
        %v173 = vsel %vm157, %v154, 0.0
        %174 = vadd.xlane.f32.xlu0 %v173
        %v175 = vpop.xlane.xlu0 %174
        %v176 = vsel %vm157, %v155, 0.0
        %177 = vadd.xlane.f32.xlu0 %v176
        %v178 = vpop.xlane.xlu0 %177
        %v179 = vsel %vm157, %v156, 0.0
        %180 = vadd.xlane.f32.xlu0 %v179
        %v181 = vpop.xlane.xlu0 %180
        %v182 = vrsqrt.pop %v160
        %v183 = vrsqrt.pop %v163
        %v184 = vrsqrt.pop %v166
        %v185 = vrsqrt.pop %v169
        %v186 = vrsqrt.pop %v172
        %v187 = vrsqrt.pop %v175
        %v188 = vrsqrt.pop %v178
        %v189 = vrsqrt.pop %v181
        %v190 = vmul.f32 %v141, %v182
        %v191 = vmul.f32 %v142, %v183
        %v192 = vmul.f32 %v143, %v184
        %v193 = vmul.f32 %v144, %v185
        %v194 = vmul.f32 %v145, %v186
        %v195 = vmul.f32 %v146, %v187
        %v196 = vmul.f32 %v147, %v188
        %v197 = vmul.f32 %v148, %v189
        %v198 = vld [vmem:[%s1] sm:$0xff]
        %v199 = vld [vmem:[%s1 + $0x8] sm:$0xff]
        %v200 = vld [vmem:[%s1 + $0x10] sm:$0xff]
        %v201 = vld [vmem:[%s1 + $0x18] sm:$0xff]
        %v202 = vmul.f32 %v198, %v198
        %v203 = vmul.f32 %v199, %v199
        %v204 = vmul.f32 %v200, %v200
        %v205 = vmul.f32 %v201, %v201
        %v206 = vadd.f32 %v202, %v203
        %v207 = vadd.f32 %v206, %v204
        %v208 = vadd.f32 %v207, %v205
        %v209 = vrot.slane %v208, 4
        %v210 = vadd.f32 %v208, %v209
        %v211 = vrot.slane %v210, 2
        %v212 = vadd.f32 %v210, %v211
        %v213 = vrot.slane %v212, 1
        %v214 = vadd.f32 %v212, %v213
        %v215 = vrsqrt.pop %v214
        %v216 = vmul.f32 %v198, %v215
        %v217 = vmul.f32 %v199, %v215
        %v218 = vmul.f32 %v200, %v215
        %v219 = vmul.f32 %v201, %v215
        %v221 = vsel %vm157, %v190, 0
        %v224 = vsel %vm157, %v191, 0
        %v227 = vsel %vm157, %v192, 0
        %v230 = vsel %vm157, %v193, 0
        %v233 = vsel %vm157, %v194, 0
        %v236 = vsel %vm157, %v195, 0
        %v239 = vsel %vm157, %v196, 0
        %v242 = vsel %vm157, %v197, 0
        %244 = vmatprep.subr.mxu0 0.0
        %245 = vmatpush1.msra.mxu0 %v216
        %246 = vmatprep.subr.mxu0 0.0
        %247 = vmatpush1.msra.mxu0 %v217
        %248 = vmatprep.subr.mxu0 0.0
        %249 = vmatpush1.msra.mxu0 %v218
        %250 = vmatprep.subr.mxu0 0.0
        %251 = vmatpush1.msra.mxu0 %v219
        %252 = vmatprep.subr.mxu0 0.0
        %253 = vmatpush1.msra.mxu0 0.0
        %254 = vmatprep.subr.mxu0 0.0
        %255 = vmatpush1.msra.mxu0 0.0
        %256 = vmatprep.subr.mxu0 0.0
        %257 = vmatpush1.msra.mxu0 0.0
        %258 = vmatprep.subr.mxu0 0.0
        %259 = vmatpush1.msra.mxu0 0.0
        %260 = vmatprep.subr.mxu0 0.0
        %261 = vmatpush1.msra.mxu0 0.0
        %262 = vmatprep.subr.mxu0 0.0
        %263 = vmatpush1.msra.mxu0 0.0
        %264 = vmatprep.subr.mxu0 0.0
        %265 = vmatpush1.msra.mxu0 0.0
        %266 = vmatprep.subr.mxu0 0.0
        %267 = vmatpush1.msra.mxu0 0.0
        %268 = vmatprep.subr.mxu0 0.0
        %269 = vmatpush1.msra.mxu0 0.0
        %270 = vmatprep.subr.mxu0 0.0
        %271 = vmatpush1.msra.mxu0 0.0
        %272 = vmatprep.subr.mxu0 0.0
        %273 = vmatpush1.msra.mxu0 0.0
        %274 = vmatprep.subr.mxu0 0.0
        %275 = vmatpush1.msra.mxu0 0.0
        %276 = vmatprep.subr.mxu0 0.0
        %277 = vmatpush1.msra.mxu0 0.0
        %278 = vmatprep.subr.mxu0 0.0
        %279 = vmatpush1.msra.mxu0 0.0
        %280 = vmatprep.subr.mxu0 0.0
        %281 = vmatpush1.msra.mxu0 0.0
        %282 = vmatprep.subr.mxu0 0.0
        %283 = vmatpush1.msra.mxu0 0.0
        %284 = vmatprep.subr.mxu0 0.0
        %285 = vmatpush1.msra.mxu0 0.0
        %286 = vmatprep.subr.mxu0 0.0
        %287 = vmatpush1.msra.mxu0 0.0
        %288 = vmatprep.subr.mxu0 0.0
        %289 = vmatpush1.msra.mxu0 0.0
        %290 = vmatprep.subr.mxu0 0.0
        %291 = vmatpush1.msra.mxu0 0.0
        %292 = vmatprep.subr.mxu0 0.0
        %293 = vmatpush1.msra.mxu0 0.0
        %294 = vmatprep.subr.mxu0 0.0
        %295 = vmatpush1.msra.mxu0 0.0
        %296 = vmatprep.subr.mxu0 0.0
        %297 = vmatpush1.msra.mxu0 0.0
        %298 = vmatprep.subr.mxu0 0.0
        %299 = vmatpush1.msra.mxu0 0.0
        %300 = vmatprep.subr.mxu0 0.0
        %301 = vmatpush1.msra.mxu0 0.0
        %302 = vmatprep.subr.mxu0 0.0
        %303 = vmatpush1.msra.mxu0 0.0
        %304 = vmatprep.subr.mxu0 0.0
        %305 = vmatpush1.msra.mxu0 0.0
        %306 = vmatprep.subr.mxu0 0.0
        %307 = vmatpush1.msra.mxu0 0.0
        %308 = vmatprep.mubr.f32.mxu0 0.0
        %309 = vmatmul.mubr.f32.gmra.mrb[0].mxu0 %v221
        %v310 = vpop.f32.mrb[0].mxu0
        %v311 = vadd.f32 0.0, %v310
        %v312 = vpop.f32.mrb[0].mxu0
        %313 = vmatprep.mubr.f32.mxu0 0.0
        %314 = vmatmul.mubr.f32.gmra.mrb[0].mxu0 %v224
        %v315 = vpop.f32.mrb[0].mxu0
        %v316 = vadd.f32 0.0, %v315
        %v317 = vpop.f32.mrb[0].mxu0
        %318 = vmatprep.mubr.f32.mxu0 0.0
        %319 = vmatmul.mubr.f32.gmra.mrb[0].mxu0 %v227
        %v320 = vpop.f32.mrb[0].mxu0
        %v321 = vadd.f32 0.0, %v320
        %v322 = vpop.f32.mrb[0].mxu0
        %323 = vmatprep.mubr.f32.mxu0 0.0
        %324 = vmatmul.mubr.f32.gmra.mrb[0].mxu0 %v230
        %v325 = vpop.f32.mrb[0].mxu0
        %v326 = vadd.f32 0.0, %v325
        %v327 = vpop.f32.mrb[0].mxu0
        %328 = vmatprep.mubr.f32.mxu0 0.0
        %329 = vmatmul.mubr.f32.gmra.mrb[0].mxu0 %v233
        %v330 = vpop.f32.mrb[0].mxu0
        %v331 = vadd.f32 0.0, %v330
        %v332 = vpop.f32.mrb[0].mxu0
        %333 = vmatprep.mubr.f32.mxu0 0.0
        %334 = vmatmul.mubr.f32.gmra.mrb[0].mxu0 %v236
        %v335 = vpop.f32.mrb[0].mxu0
        %v336 = vadd.f32 0.0, %v335
        %v337 = vpop.f32.mrb[0].mxu0
        %338 = vmatprep.mubr.f32.mxu0 0.0
        %339 = vmatmul.mubr.f32.gmra.mrb[0].mxu0 %v239
        %v340 = vpop.f32.mrb[0].mxu0
        %v341 = vadd.f32 0.0, %v340
        %v342 = vpop.f32.mrb[0].mxu0
        %343 = vmatprep.mubr.f32.mxu0 0.0
        %344 = vmatmul.mubr.f32.gmra.mrb[0].mxu0 %v242
        %v345 = vpop.f32.mrb[0].mxu0
        %v346 = vadd.f32 0.0, %v345
        %v347 = vpop.f32.mrb[0].mxu0
        %348 = vdwg.mxu0
        %v349 = vlaneseq
        %v350 = vand.u32 %v349, 127
        %351 = vmax.xlane.f32.xlu0 %v311
        %v352 = vpop.xlane.xlu0 %351
        %353 = vmax.xlane.f32.xlu0 %v316
        %v354 = vpop.xlane.xlu0 %353
        %355 = vmax.xlane.f32.xlu0 %v321
        %v356 = vpop.xlane.xlu0 %355
        %357 = vmax.xlane.f32.xlu0 %v326
        %v358 = vpop.xlane.xlu0 %357
        %359 = vmax.xlane.f32.xlu0 %v331
        %v360 = vpop.xlane.xlu0 %359
        %361 = vmax.xlane.f32.xlu0 %v336
        %v362 = vpop.xlane.xlu0 %361
        %363 = vmax.xlane.f32.xlu0 %v341
        %v364 = vpop.xlane.xlu0 %363
        %365 = vmax.xlane.f32.xlu0 %v346
        %v366 = vpop.xlane.xlu0 %365
        %v367 = vadd.f32 %v352, 0.0
        %v368 = vadd.f32 %v354, 0.0
        %v369 = vadd.f32 %v356, 0.0
        %v370 = vadd.f32 %v358, 0.0
        %v371 = vadd.f32 %v360, 0.0
        %v372 = vadd.f32 %v362, 0.0
        %v373 = vadd.f32 %v364, 0.0
        %v374 = vadd.f32 %v366, 0.0
        %vm375 = vcmp.eq.f32.partialorder %v311, %v352
        %vm376 = vcmp.eq.f32.partialorder %v316, %v354
        %vm377 = vcmp.eq.f32.partialorder %v321, %v356
        %vm378 = vcmp.eq.f32.partialorder %v326, %v358
        %vm379 = vcmp.eq.f32.partialorder %v331, %v360
        %vm380 = vcmp.eq.f32.partialorder %v336, %v362
        %vm381 = vcmp.eq.f32.partialorder %v341, %v364
        %vm382 = vcmp.eq.f32.partialorder %v346, %v366
        %v383 = vsel %vm375, %v350, 128
        %v384 = vsel %vm376, %v350, 128
        %v385 = vsel %vm377, %v350, 128
        %v386 = vsel %vm378, %v350, 128
        %v387 = vsel %vm379, %v350, 128
        %v388 = vsel %vm380, %v350, 128
        %v389 = vsel %vm381, %v350, 128
        %v390 = vsel %vm382, %v350, 128
        %v391 = vand.u32 %v383, 65535
        %v392 = vshra.s32 %v383, 16
        %v393 = vcvt.s32.f32 %v391
        %v394 = vcvt.s32.f32 %v392
        %395 = vmin.xlane.f32.xlu0 %v394
        %v396 = vpop.xlane.xlu0 %395
        %vm397 = vcmp.eq.f32.partialorder %v394, %v396
        %v398 = vsel %vm397, %v393, inf
        %399 = vmin.xlane.f32.xlu0 %v398
        %v400 = vpop.xlane.xlu0 %399
        %v401 = vcvt.f32.s32 %v400
        %v402 = vcvt.f32.s32 %v396
        %v403 = vshll.u32 %v402, 16
        %v404 = vadd.s32 %v403, %v401
        %v405 = vand.u32 %v384, 65535
        %v406 = vshra.s32 %v384, 16
        %v407 = vcvt.s32.f32 %v405
        %v408 = vcvt.s32.f32 %v406
        %409 = vmin.xlane.f32.xlu0 %v408
        %v410 = vpop.xlane.xlu0 %409
        %vm411 = vcmp.eq.f32.partialorder %v408, %v410
        %v412 = vsel %vm411, %v407, inf
        %413 = vmin.xlane.f32.xlu0 %v412
        %v414 = vpop.xlane.xlu0 %413
        %v415 = vcvt.f32.s32 %v414
        %v416 = vcvt.f32.s32 %v410
        %v417 = vshll.u32 %v416, 16
        %v418 = vadd.s32 %v417, %v415
        %v419 = vand.u32 %v385, 65535
        %v420 = vshra.s32 %v385, 16
        %v421 = vcvt.s32.f32 %v419
        %v422 = vcvt.s32.f32 %v420
        %423 = vmin.xlane.f32.xlu0 %v422
        %v424 = vpop.xlane.xlu0 %423
        %vm425 = vcmp.eq.f32.partialorder %v422, %v424
        %v426 = vsel %vm425, %v421, inf
        %427 = vmin.xlane.f32.xlu0 %v426
        %v428 = vpop.xlane.xlu0 %427
        %v429 = vcvt.f32.s32 %v428
        %v430 = vcvt.f32.s32 %v424
        %v431 = vshll.u32 %v430, 16
        %v432 = vadd.s32 %v431, %v429
        %v433 = vand.u32 %v386, 65535
        %v434 = vshra.s32 %v386, 16
        %v435 = vcvt.s32.f32 %v433
        %v436 = vcvt.s32.f32 %v434
        %437 = vmin.xlane.f32.xlu0 %v436
        %v438 = vpop.xlane.xlu0 %437
        %vm439 = vcmp.eq.f32.partialorder %v436, %v438
        %v440 = vsel %vm439, %v435, inf
        %441 = vmin.xlane.f32.xlu0 %v440
        %v442 = vpop.xlane.xlu0 %441
        %v443 = vcvt.f32.s32 %v442
        %v444 = vcvt.f32.s32 %v438
        %v445 = vshll.u32 %v444, 16
        %v446 = vadd.s32 %v445, %v443
        %v447 = vand.u32 %v387, 65535
        %v448 = vshra.s32 %v387, 16
        %v449 = vcvt.s32.f32 %v447
        %v450 = vcvt.s32.f32 %v448
        %451 = vmin.xlane.f32.xlu0 %v450
        %v452 = vpop.xlane.xlu0 %451
        %vm453 = vcmp.eq.f32.partialorder %v450, %v452
        %v454 = vsel %vm453, %v449, inf
        %455 = vmin.xlane.f32.xlu0 %v454
        %v456 = vpop.xlane.xlu0 %455
        %v457 = vcvt.f32.s32 %v456
        %v458 = vcvt.f32.s32 %v452
        %v459 = vshll.u32 %v458, 16
        %v460 = vadd.s32 %v459, %v457
        %v461 = vand.u32 %v388, 65535
        %v462 = vshra.s32 %v388, 16
        %v463 = vcvt.s32.f32 %v461
        %v464 = vcvt.s32.f32 %v462
        %465 = vmin.xlane.f32.xlu0 %v464
        %v466 = vpop.xlane.xlu0 %465
        %vm467 = vcmp.eq.f32.partialorder %v464, %v466
        %v468 = vsel %vm467, %v463, inf
        %469 = vmin.xlane.f32.xlu0 %v468
        %v470 = vpop.xlane.xlu0 %469
        %v471 = vcvt.f32.s32 %v470
        %v472 = vcvt.f32.s32 %v466
        %v473 = vshll.u32 %v472, 16
        %v474 = vadd.s32 %v473, %v471
        %v475 = vand.u32 %v389, 65535
        %v476 = vshra.s32 %v389, 16
        %v477 = vcvt.s32.f32 %v475
        %v478 = vcvt.s32.f32 %v476
        %479 = vmin.xlane.f32.xlu0 %v478
        %v480 = vpop.xlane.xlu0 %479
        %vm481 = vcmp.eq.f32.partialorder %v478, %v480
        %v482 = vsel %vm481, %v477, inf
        %483 = vmin.xlane.f32.xlu0 %v482
        %v484 = vpop.xlane.xlu0 %483
        %v485 = vcvt.f32.s32 %v484
        %v486 = vcvt.f32.s32 %v480
        %v487 = vshll.u32 %v486, 16
        %v488 = vadd.s32 %v487, %v485
        %v489 = vand.u32 %v390, 65535
        %v490 = vshra.s32 %v390, 16
        %v491 = vcvt.s32.f32 %v489
        %v492 = vcvt.s32.f32 %v490
        %493 = vmin.xlane.f32.xlu0 %v492
        %v494 = vpop.xlane.xlu0 %493
        %vm495 = vcmp.eq.f32.partialorder %v492, %v494
        %v496 = vsel %vm495, %v491, inf
        %497 = vmin.xlane.f32.xlu0 %v496
        %v498 = vpop.xlane.xlu0 %497
        %v499 = vcvt.f32.s32 %v498
        %v500 = vcvt.f32.s32 %v494
        %v501 = vshll.u32 %v500, 16
        %v502 = vadd.s32 %v501, %v499
        %vm503 = vcmp.eq.s32.totalorder %v350, %v404
        %vm504 = vcmp.eq.s32.totalorder %v350, %v418
        %vm505 = vcmp.eq.s32.totalorder %v350, %v432
        %vm506 = vcmp.eq.s32.totalorder %v350, %v446
        %vm507 = vcmp.eq.s32.totalorder %v350, %v460
        %vm508 = vcmp.eq.s32.totalorder %v350, %v474
        %vm509 = vcmp.eq.s32.totalorder %v350, %v488
        %vm510 = vcmp.eq.s32.totalorder %v350, %v502
        %v511 = vsel %vm503, -inf, %v311
        %v512 = vsel %vm504, -inf, %v316
        %v513 = vsel %vm505, -inf, %v321
        %v514 = vsel %vm506, -inf, %v326
        %v515 = vsel %vm507, -inf, %v331
        %v516 = vsel %vm508, -inf, %v336
        %v517 = vsel %vm509, -inf, %v341
        %v518 = vsel %vm510, -inf, %v346
        %519 = vmax.xlane.f32.xlu0 %v511
        %v520 = vpop.xlane.xlu0 %519
        %521 = vmax.xlane.f32.xlu0 %v512
        %v522 = vpop.xlane.xlu0 %521
        %523 = vmax.xlane.f32.xlu0 %v513
        %v524 = vpop.xlane.xlu0 %523
        %525 = vmax.xlane.f32.xlu0 %v514
        %v526 = vpop.xlane.xlu0 %525
        %527 = vmax.xlane.f32.xlu0 %v515
        %v528 = vpop.xlane.xlu0 %527
        %529 = vmax.xlane.f32.xlu0 %v516
        %v530 = vpop.xlane.xlu0 %529
        %531 = vmax.xlane.f32.xlu0 %v517
        %v532 = vpop.xlane.xlu0 %531
        %533 = vmax.xlane.f32.xlu0 %v518
        %v534 = vpop.xlane.xlu0 %533
        %v535 = vadd.f32 %v367, %v520
        %v536 = vadd.f32 %v368, %v522
        %v537 = vadd.f32 %v369, %v524
        %v538 = vadd.f32 %v370, %v526
        %v539 = vadd.f32 %v371, %v528
        %v540 = vadd.f32 %v372, %v530
        %v541 = vadd.f32 %v373, %v532
        %v542 = vadd.f32 %v374, %v534
        %vm543 = vcmp.eq.f32.partialorder %v511, %v520
        %vm544 = vcmp.eq.f32.partialorder %v512, %v522
        %vm545 = vcmp.eq.f32.partialorder %v513, %v524
        %vm546 = vcmp.eq.f32.partialorder %v514, %v526
        %vm547 = vcmp.eq.f32.partialorder %v515, %v528
        %vm548 = vcmp.eq.f32.partialorder %v516, %v530
        %vm549 = vcmp.eq.f32.partialorder %v517, %v532
        %vm550 = vcmp.eq.f32.partialorder %v518, %v534
        %v551 = vsel %vm543, %v350, 128
        %v552 = vsel %vm544, %v350, 128
        %v553 = vsel %vm545, %v350, 128
        %v554 = vsel %vm546, %v350, 128
        %v555 = vsel %vm547, %v350, 128
        %v556 = vsel %vm548, %v350, 128
        %v557 = vsel %vm549, %v350, 128
        %v558 = vsel %vm550, %v350, 128
        %v559 = vand.u32 %v551, 65535
        %v560 = vshra.s32 %v551, 16
        %v561 = vcvt.s32.f32 %v559
        %v562 = vcvt.s32.f32 %v560
        %563 = vmin.xlane.f32.xlu0 %v562
        %v564 = vpop.xlane.xlu0 %563
        %vm565 = vcmp.eq.f32.partialorder %v562, %v564
        %v566 = vsel %vm565, %v561, inf
        %567 = vmin.xlane.f32.xlu0 %v566
        %v568 = vpop.xlane.xlu0 %567
        %v569 = vcvt.f32.s32 %v568
        %v570 = vcvt.f32.s32 %v564
        %v571 = vshll.u32 %v570, 16
        %v572 = vadd.s32 %v571, %v569
        %v573 = vand.u32 %v552, 65535
        %v574 = vshra.s32 %v552, 16
        %v575 = vcvt.s32.f32 %v573
        %v576 = vcvt.s32.f32 %v574
        %577 = vmin.xlane.f32.xlu0 %v576
        %v578 = vpop.xlane.xlu0 %577
        %vm579 = vcmp.eq.f32.partialorder %v576, %v578
        %v580 = vsel %vm579, %v575, inf
        %581 = vmin.xlane.f32.xlu0 %v580
        %v582 = vpop.xlane.xlu0 %581
        %v583 = vcvt.f32.s32 %v582
        %v584 = vcvt.f32.s32 %v578
        %v585 = vshll.u32 %v584, 16
        %v586 = vadd.s32 %v585, %v583
        %v587 = vand.u32 %v553, 65535
        %v588 = vshra.s32 %v553, 16
        %v589 = vcvt.s32.f32 %v587
        %v590 = vcvt.s32.f32 %v588
        %591 = vmin.xlane.f32.xlu0 %v590
        %v592 = vpop.xlane.xlu0 %591
        %vm593 = vcmp.eq.f32.partialorder %v590, %v592
        %v594 = vsel %vm593, %v589, inf
        %595 = vmin.xlane.f32.xlu0 %v594
        %v596 = vpop.xlane.xlu0 %595
        %v597 = vcvt.f32.s32 %v596
        %v598 = vcvt.f32.s32 %v592
        %v599 = vshll.u32 %v598, 16
        %v600 = vadd.s32 %v599, %v597
        %v601 = vand.u32 %v554, 65535
        %v602 = vshra.s32 %v554, 16
        %v603 = vcvt.s32.f32 %v601
        %v604 = vcvt.s32.f32 %v602
        %605 = vmin.xlane.f32.xlu0 %v604
        %v606 = vpop.xlane.xlu0 %605
        %vm607 = vcmp.eq.f32.partialorder %v604, %v606
        %v608 = vsel %vm607, %v603, inf
        %609 = vmin.xlane.f32.xlu0 %v608
        %v610 = vpop.xlane.xlu0 %609
        %v611 = vcvt.f32.s32 %v610
        %v612 = vcvt.f32.s32 %v606
        %v613 = vshll.u32 %v612, 16
        %v614 = vadd.s32 %v613, %v611
        %v615 = vand.u32 %v555, 65535
        %v616 = vshra.s32 %v555, 16
        %v617 = vcvt.s32.f32 %v615
        %v618 = vcvt.s32.f32 %v616
        %619 = vmin.xlane.f32.xlu0 %v618
        %v620 = vpop.xlane.xlu0 %619
        %vm621 = vcmp.eq.f32.partialorder %v618, %v620
        %v622 = vsel %vm621, %v617, inf
        %623 = vmin.xlane.f32.xlu0 %v622
        %v624 = vpop.xlane.xlu0 %623
        %v625 = vcvt.f32.s32 %v624
        %v626 = vcvt.f32.s32 %v620
        %v627 = vshll.u32 %v626, 16
        %v628 = vadd.s32 %v627, %v625
        %v629 = vand.u32 %v556, 65535
        %v630 = vshra.s32 %v556, 16
        %v631 = vcvt.s32.f32 %v629
        %v632 = vcvt.s32.f32 %v630
        %633 = vmin.xlane.f32.xlu0 %v632
        %v634 = vpop.xlane.xlu0 %633
        %vm635 = vcmp.eq.f32.partialorder %v632, %v634
        %v636 = vsel %vm635, %v631, inf
        %637 = vmin.xlane.f32.xlu0 %v636
        %v638 = vpop.xlane.xlu0 %637
        %v639 = vcvt.f32.s32 %v638
        %v640 = vcvt.f32.s32 %v634
        %v641 = vshll.u32 %v640, 16
        %v642 = vadd.s32 %v641, %v639
        %v643 = vand.u32 %v557, 65535
        %v644 = vshra.s32 %v557, 16
        %v645 = vcvt.s32.f32 %v643
        %v646 = vcvt.s32.f32 %v644
        %647 = vmin.xlane.f32.xlu0 %v646
        %v648 = vpop.xlane.xlu0 %647
        %vm649 = vcmp.eq.f32.partialorder %v646, %v648
        %v650 = vsel %vm649, %v645, inf
        %651 = vmin.xlane.f32.xlu0 %v650
        %v652 = vpop.xlane.xlu0 %651
        %v653 = vcvt.f32.s32 %v652
        %v654 = vcvt.f32.s32 %v648
        %v655 = vshll.u32 %v654, 16
        %v656 = vadd.s32 %v655, %v653
        %v657 = vand.u32 %v558, 65535
        %v658 = vshra.s32 %v558, 16
        %v659 = vcvt.s32.f32 %v657
        %v660 = vcvt.s32.f32 %v658
        %661 = vmin.xlane.f32.xlu0 %v660
        %v662 = vpop.xlane.xlu0 %661
        %vm663 = vcmp.eq.f32.partialorder %v660, %v662
        %v664 = vsel %vm663, %v659, inf
        %665 = vmin.xlane.f32.xlu0 %v664
        %v666 = vpop.xlane.xlu0 %665
        %v667 = vcvt.f32.s32 %v666
        %v668 = vcvt.f32.s32 %v662
        %v669 = vshll.u32 %v668, 16
        %v670 = vadd.s32 %v669, %v667
        %vm671 = vcmp.eq.s32.totalorder %v350, %v572
        %vm672 = vcmp.eq.s32.totalorder %v350, %v586
        %vm673 = vcmp.eq.s32.totalorder %v350, %v600
        %vm674 = vcmp.eq.s32.totalorder %v350, %v614
        %vm675 = vcmp.eq.s32.totalorder %v350, %v628
        %vm676 = vcmp.eq.s32.totalorder %v350, %v642
        %vm677 = vcmp.eq.s32.totalorder %v350, %v656
        %vm678 = vcmp.eq.s32.totalorder %v350, %v670
        %v679 = vsel %vm671, -inf, %v511
        %v680 = vsel %vm672, -inf, %v512
        %v681 = vsel %vm673, -inf, %v513
        %v682 = vsel %vm674, -inf, %v514
        %v683 = vsel %vm675, -inf, %v515
        %v684 = vsel %vm676, -inf, %v516
        %v685 = vsel %vm677, -inf, %v517
        %v686 = vsel %vm678, -inf, %v518
        %687 = vmax.xlane.f32.xlu0 %v679
        %v688 = vpop.xlane.xlu0 %687
        %689 = vmax.xlane.f32.xlu0 %v680
        %v690 = vpop.xlane.xlu0 %689
        %691 = vmax.xlane.f32.xlu0 %v681
        %v692 = vpop.xlane.xlu0 %691
        %693 = vmax.xlane.f32.xlu0 %v682
        %v694 = vpop.xlane.xlu0 %693
        %695 = vmax.xlane.f32.xlu0 %v683
        %v696 = vpop.xlane.xlu0 %695
        %697 = vmax.xlane.f32.xlu0 %v684
        %v698 = vpop.xlane.xlu0 %697
        %699 = vmax.xlane.f32.xlu0 %v685
        %v700 = vpop.xlane.xlu0 %699
        %701 = vmax.xlane.f32.xlu0 %v686
        %v702 = vpop.xlane.xlu0 %701
        %v703 = vadd.f32 %v535, %v688
        %v704 = vadd.f32 %v536, %v690
        %v705 = vadd.f32 %v537, %v692
        %v706 = vadd.f32 %v538, %v694
        %v707 = vadd.f32 %v539, %v696
        %v708 = vadd.f32 %v540, %v698
        %v709 = vadd.f32 %v541, %v700
        %v710 = vadd.f32 %v542, %v702
        %v711 = vadd.f32 %v703, %v704
        %v712 = vadd.f32 %v711, %v705
        %v713 = vadd.f32 %v712, %v706
        %v714 = vadd.f32 %v713, %v707
        %v715 = vadd.f32 %v714, %v708
        %v716 = vadd.f32 %v715, %v709
        %v717 = vadd.f32 %v716, %v710
        %v718 = vrot.slane %v717, 4
        %v719 = vadd.f32 %v717, %v718
        %v720 = vrot.slane %v719, 2
        %v721 = vadd.f32 %v719, %v720
        %v722 = vrot.slane %v721, 1
        %v723 = vadd.f32 %v721, %v722
        %vm724 = vcmask 0
        %725 = vst.msk [vmem:[%s135] sm:$0x1] %vm724, %v723
        %s726 = scalar_lea.vmem %s1, 32
        %v727 = vld [vmem:[%s726] sm:$0xff]
        %v728 = vld [vmem:[%s726 + $0x8] sm:$0xff]
        %v729 = vld [vmem:[%s726 + $0x10] sm:$0xff]
        %v730 = vld [vmem:[%s726 + $0x18] sm:$0xff]
        %v731 = vmul.f32 %v727, %v727
        %v732 = vmul.f32 %v728, %v728
        %v733 = vmul.f32 %v729, %v729
        %v734 = vmul.f32 %v730, %v730
        %v735 = vadd.f32 %v731, %v732
        %v736 = vadd.f32 %v735, %v733
        %v737 = vadd.f32 %v736, %v734
        %v738 = vrot.slane %v737, 4
        %v739 = vadd.f32 %v737, %v738
        %v740 = vrot.slane %v739, 2
        %v741 = vadd.f32 %v739, %v740
        %v742 = vrot.slane %v741, 1
        %v743 = vadd.f32 %v741, %v742
        %v744 = vrsqrt.pop %v743
        %v745 = vmul.f32 %v727, %v744
        %v746 = vmul.f32 %v728, %v744
        %v747 = vmul.f32 %v729, %v744
        %v748 = vmul.f32 %v730, %v744
        %749 = vmatprep.subr.mxu0 0.0
        %750 = vmatpush1.msra.mxu0 %v745
        %751 = vmatprep.subr.mxu0 0.0
        %752 = vmatpush1.msra.mxu0 %v746
        %753 = vmatprep.subr.mxu0 0.0
        %754 = vmatpush1.msra.mxu0 %v747
        %755 = vmatprep.subr.mxu0 0.0
        %756 = vmatpush1.msra.mxu0 %v748
        %757 = vmatprep.subr.mxu0 0.0
        %758 = vmatpush1.msra.mxu0 0.0
        %759 = vmatprep.subr.mxu0 0.0
        %760 = vmatpush1.msra.mxu0 0.0
        %761 = vmatprep.subr.mxu0 0.0
        %762 = vmatpush1.msra.mxu0 0.0
        %763 = vmatprep.subr.mxu0 0.0
        %764 = vmatpush1.msra.mxu0 0.0
        %765 = vmatprep.subr.mxu0 0.0
        %766 = vmatpush1.msra.mxu0 0.0
        %767 = vmatprep.subr.mxu0 0.0
        %768 = vmatpush1.msra.mxu0 0.0
        %769 = vmatprep.subr.mxu0 0.0
        %770 = vmatpush1.msra.mxu0 0.0
        %771 = vmatprep.subr.mxu0 0.0
        %772 = vmatpush1.msra.mxu0 0.0
        %773 = vmatprep.subr.mxu0 0.0
        %774 = vmatpush1.msra.mxu0 0.0
        %775 = vmatprep.subr.mxu0 0.0
        %776 = vmatpush1.msra.mxu0 0.0
        %777 = vmatprep.subr.mxu0 0.0
        %778 = vmatpush1.msra.mxu0 0.0
        %779 = vmatprep.subr.mxu0 0.0
        %780 = vmatpush1.msra.mxu0 0.0
        %781 = vmatprep.subr.mxu0 0.0
        %782 = vmatpush1.msra.mxu0 0.0
        %783 = vmatprep.subr.mxu0 0.0
        %784 = vmatpush1.msra.mxu0 0.0
        %785 = vmatprep.subr.mxu0 0.0
        %786 = vmatpush1.msra.mxu0 0.0
        %787 = vmatprep.subr.mxu0 0.0
        %788 = vmatpush1.msra.mxu0 0.0
        %789 = vmatprep.subr.mxu0 0.0
        %790 = vmatpush1.msra.mxu0 0.0
        %791 = vmatprep.subr.mxu0 0.0
        %792 = vmatpush1.msra.mxu0 0.0
        %793 = vmatprep.subr.mxu0 0.0
        %794 = vmatpush1.msra.mxu0 0.0
        %795 = vmatprep.subr.mxu0 0.0
        %796 = vmatpush1.msra.mxu0 0.0
        %797 = vmatprep.subr.mxu0 0.0
        %798 = vmatpush1.msra.mxu0 0.0
        %799 = vmatprep.subr.mxu0 0.0
        %800 = vmatpush1.msra.mxu0 0.0
        %801 = vmatprep.subr.mxu0 0.0
        %802 = vmatpush1.msra.mxu0 0.0
        %803 = vmatprep.subr.mxu0 0.0
        %804 = vmatpush1.msra.mxu0 0.0
        %805 = vmatprep.subr.mxu0 0.0
        %806 = vmatpush1.msra.mxu0 0.0
        %807 = vmatprep.subr.mxu0 0.0
        %808 = vmatpush1.msra.mxu0 0.0
        %809 = vmatprep.subr.mxu0 0.0
        %810 = vmatpush1.msra.mxu0 0.0
        %811 = vmatprep.subr.mxu0 0.0
        %812 = vmatpush1.msra.mxu0 0.0
        %813 = vmatprep.mubr.f32.mxu0 0.0
        %814 = vmatmul.mubr.f32.gmra.mrb[0].mxu0 %v221
        %v815 = vpop.f32.mrb[0].mxu0
        %v816 = vadd.f32 0.0, %v815
        %v817 = vpop.f32.mrb[0].mxu0
        %818 = vmatprep.mubr.f32.mxu0 0.0
        %819 = vmatmul.mubr.f32.gmra.mrb[0].mxu0 %v224
        %v820 = vpop.f32.mrb[0].mxu0
        %v821 = vadd.f32 0.0, %v820
        %v822 = vpop.f32.mrb[0].mxu0
        %823 = vmatprep.mubr.f32.mxu0 0.0
        %824 = vmatmul.mubr.f32.gmra.mrb[0].mxu0 %v227
        %v825 = vpop.f32.mrb[0].mxu0
        %v826 = vadd.f32 0.0, %v825
        %v827 = vpop.f32.mrb[0].mxu0
        %828 = vmatprep.mubr.f32.mxu0 0.0
        %829 = vmatmul.mubr.f32.gmra.mrb[0].mxu0 %v230
        %v830 = vpop.f32.mrb[0].mxu0
        %v831 = vadd.f32 0.0, %v830
        %v832 = vpop.f32.mrb[0].mxu0
        %833 = vmatprep.mubr.f32.mxu0 0.0
        %834 = vmatmul.mubr.f32.gmra.mrb[0].mxu0 %v233
        %v835 = vpop.f32.mrb[0].mxu0
        %v836 = vadd.f32 0.0, %v835
        %v837 = vpop.f32.mrb[0].mxu0
        %838 = vmatprep.mubr.f32.mxu0 0.0
        %839 = vmatmul.mubr.f32.gmra.mrb[0].mxu0 %v236
        %v840 = vpop.f32.mrb[0].mxu0
        %v841 = vadd.f32 0.0, %v840
        %v842 = vpop.f32.mrb[0].mxu0
        %843 = vmatprep.mubr.f32.mxu0 0.0
        %844 = vmatmul.mubr.f32.gmra.mrb[0].mxu0 %v239
        %v845 = vpop.f32.mrb[0].mxu0
        %v846 = vadd.f32 0.0, %v845
        %v847 = vpop.f32.mrb[0].mxu0
        %848 = vmatprep.mubr.f32.mxu0 0.0
        %849 = vmatmul.mubr.f32.gmra.mrb[0].mxu0 %v242
        %v850 = vpop.f32.mrb[0].mxu0
        %v851 = vadd.f32 0.0, %v850
        %v852 = vpop.f32.mrb[0].mxu0
        %853 = vdwg.mxu0
        %854 = vmax.xlane.f32.xlu0 %v816
        %v855 = vpop.xlane.xlu0 %854
        %856 = vmax.xlane.f32.xlu0 %v821
        %v857 = vpop.xlane.xlu0 %856
        %858 = vmax.xlane.f32.xlu0 %v826
        %v859 = vpop.xlane.xlu0 %858
        %860 = vmax.xlane.f32.xlu0 %v831
        %v861 = vpop.xlane.xlu0 %860
        %862 = vmax.xlane.f32.xlu0 %v836
        %v863 = vpop.xlane.xlu0 %862
        %864 = vmax.xlane.f32.xlu0 %v841
        %v865 = vpop.xlane.xlu0 %864
        %866 = vmax.xlane.f32.xlu0 %v846
        %v867 = vpop.xlane.xlu0 %866
        %868 = vmax.xlane.f32.xlu0 %v851
        %v869 = vpop.xlane.xlu0 %868
        %v870 = vadd.f32 %v855, 0.0
        %v871 = vadd.f32 %v857, 0.0
        %v872 = vadd.f32 %v859, 0.0
        %v873 = vadd.f32 %v861, 0.0
        %v874 = vadd.f32 %v863, 0.0
        %v875 = vadd.f32 %v865, 0.0
        %v876 = vadd.f32 %v867, 0.0
        %v877 = vadd.f32 %v869, 0.0
        %vm878 = vcmp.eq.f32.partialorder %v816, %v855
        %vm879 = vcmp.eq.f32.partialorder %v821, %v857
        %vm880 = vcmp.eq.f32.partialorder %v826, %v859
        %vm881 = vcmp.eq.f32.partialorder %v831, %v861
        %vm882 = vcmp.eq.f32.partialorder %v836, %v863
        %vm883 = vcmp.eq.f32.partialorder %v841, %v865
        %vm884 = vcmp.eq.f32.partialorder %v846, %v867
        %vm885 = vcmp.eq.f32.partialorder %v851, %v869
        %v886 = vsel %vm878, %v350, 128
        %v887 = vsel %vm879, %v350, 128
        %v888 = vsel %vm880, %v350, 128
        %v889 = vsel %vm881, %v350, 128
        %v890 = vsel %vm882, %v350, 128
        %v891 = vsel %vm883, %v350, 128
        %v892 = vsel %vm884, %v350, 128
        %v893 = vsel %vm885, %v350, 128
        %v894 = vand.u32 %v886, 65535
        %v895 = vshra.s32 %v886, 16
        %v896 = vcvt.s32.f32 %v894
        %v897 = vcvt.s32.f32 %v895
        %898 = vmin.xlane.f32.xlu0 %v897
        %v899 = vpop.xlane.xlu0 %898
        %vm900 = vcmp.eq.f32.partialorder %v897, %v899
        %v901 = vsel %vm900, %v896, inf
        %902 = vmin.xlane.f32.xlu0 %v901
        %v903 = vpop.xlane.xlu0 %902
        %v904 = vcvt.f32.s32 %v903
        %v905 = vcvt.f32.s32 %v899
        %v906 = vshll.u32 %v905, 16
        %v907 = vadd.s32 %v906, %v904
        %v908 = vand.u32 %v887, 65535
        %v909 = vshra.s32 %v887, 16
        %v910 = vcvt.s32.f32 %v908
        %v911 = vcvt.s32.f32 %v909
        %912 = vmin.xlane.f32.xlu0 %v911
        %v913 = vpop.xlane.xlu0 %912
        %vm914 = vcmp.eq.f32.partialorder %v911, %v913
        %v915 = vsel %vm914, %v910, inf
        %916 = vmin.xlane.f32.xlu0 %v915
        %v917 = vpop.xlane.xlu0 %916
        %v918 = vcvt.f32.s32 %v917
        %v919 = vcvt.f32.s32 %v913
        %v920 = vshll.u32 %v919, 16
        %v921 = vadd.s32 %v920, %v918
        %v922 = vand.u32 %v888, 65535
        %v923 = vshra.s32 %v888, 16
        %v924 = vcvt.s32.f32 %v922
        %v925 = vcvt.s32.f32 %v923
        %926 = vmin.xlane.f32.xlu0 %v925
        %v927 = vpop.xlane.xlu0 %926
        %vm928 = vcmp.eq.f32.partialorder %v925, %v927
        %v929 = vsel %vm928, %v924, inf
        %930 = vmin.xlane.f32.xlu0 %v929
        %v931 = vpop.xlane.xlu0 %930
        %v932 = vcvt.f32.s32 %v931
        %v933 = vcvt.f32.s32 %v927
        %v934 = vshll.u32 %v933, 16
        %v935 = vadd.s32 %v934, %v932
        %v936 = vand.u32 %v889, 65535
        %v937 = vshra.s32 %v889, 16
        %v938 = vcvt.s32.f32 %v936
        %v939 = vcvt.s32.f32 %v937
        %940 = vmin.xlane.f32.xlu0 %v939
        %v941 = vpop.xlane.xlu0 %940
        %vm942 = vcmp.eq.f32.partialorder %v939, %v941
        %v943 = vsel %vm942, %v938, inf
        %944 = vmin.xlane.f32.xlu0 %v943
        %v945 = vpop.xlane.xlu0 %944
        %v946 = vcvt.f32.s32 %v945
        %v947 = vcvt.f32.s32 %v941
        %v948 = vshll.u32 %v947, 16
        %v949 = vadd.s32 %v948, %v946
        %v950 = vand.u32 %v890, 65535
        %v951 = vshra.s32 %v890, 16
        %v952 = vcvt.s32.f32 %v950
        %v953 = vcvt.s32.f32 %v951
        %954 = vmin.xlane.f32.xlu0 %v953
        %v955 = vpop.xlane.xlu0 %954
        %vm956 = vcmp.eq.f32.partialorder %v953, %v955
        %v957 = vsel %vm956, %v952, inf
        %958 = vmin.xlane.f32.xlu0 %v957
        %v959 = vpop.xlane.xlu0 %958
        %v960 = vcvt.f32.s32 %v959
        %v961 = vcvt.f32.s32 %v955
        %v962 = vshll.u32 %v961, 16
        %v963 = vadd.s32 %v962, %v960
        %v964 = vand.u32 %v891, 65535
        %v965 = vshra.s32 %v891, 16
        %v966 = vcvt.s32.f32 %v964
        %v967 = vcvt.s32.f32 %v965
        %968 = vmin.xlane.f32.xlu0 %v967
        %v969 = vpop.xlane.xlu0 %968
        %vm970 = vcmp.eq.f32.partialorder %v967, %v969
        %v971 = vsel %vm970, %v966, inf
        %972 = vmin.xlane.f32.xlu0 %v971
        %v973 = vpop.xlane.xlu0 %972
        %v974 = vcvt.f32.s32 %v973
        %v975 = vcvt.f32.s32 %v969
        %v976 = vshll.u32 %v975, 16
        %v977 = vadd.s32 %v976, %v974
        %v978 = vand.u32 %v892, 65535
        %v979 = vshra.s32 %v892, 16
        %v980 = vcvt.s32.f32 %v978
        %v981 = vcvt.s32.f32 %v979
        %982 = vmin.xlane.f32.xlu0 %v981
        %v983 = vpop.xlane.xlu0 %982
        %vm984 = vcmp.eq.f32.partialorder %v981, %v983
        %v985 = vsel %vm984, %v980, inf
        %986 = vmin.xlane.f32.xlu0 %v985
        %v987 = vpop.xlane.xlu0 %986
        %v988 = vcvt.f32.s32 %v987
        %v989 = vcvt.f32.s32 %v983
        %v990 = vshll.u32 %v989, 16
        %v991 = vadd.s32 %v990, %v988
        %v992 = vand.u32 %v893, 65535
        %v993 = vshra.s32 %v893, 16
        %v994 = vcvt.s32.f32 %v992
        %v995 = vcvt.s32.f32 %v993
        %996 = vmin.xlane.f32.xlu0 %v995
        %v997 = vpop.xlane.xlu0 %996
        %vm998 = vcmp.eq.f32.partialorder %v995, %v997
        %v999 = vsel %vm998, %v994, inf
        %1000 = vmin.xlane.f32.xlu0 %v999
        %v1001 = vpop.xlane.xlu0 %1000
        %v1002 = vcvt.f32.s32 %v1001
        %v1003 = vcvt.f32.s32 %v997
        %v1004 = vshll.u32 %v1003, 16
        %v1005 = vadd.s32 %v1004, %v1002
        %vm1006 = vcmp.eq.s32.totalorder %v350, %v907
        %vm1007 = vcmp.eq.s32.totalorder %v350, %v921
        %vm1008 = vcmp.eq.s32.totalorder %v350, %v935
        %vm1009 = vcmp.eq.s32.totalorder %v350, %v949
        %vm1010 = vcmp.eq.s32.totalorder %v350, %v963
        %vm1011 = vcmp.eq.s32.totalorder %v350, %v977
        %vm1012 = vcmp.eq.s32.totalorder %v350, %v991
        %vm1013 = vcmp.eq.s32.totalorder %v350, %v1005
        %v1014 = vsel %vm1006, -inf, %v816
        %v1015 = vsel %vm1007, -inf, %v821
        %v1016 = vsel %vm1008, -inf, %v826
        %v1017 = vsel %vm1009, -inf, %v831
        %v1018 = vsel %vm1010, -inf, %v836
        %v1019 = vsel %vm1011, -inf, %v841
        %v1020 = vsel %vm1012, -inf, %v846
        %v1021 = vsel %vm1013, -inf, %v851
        %1022 = vmax.xlane.f32.xlu0 %v1014
        %v1023 = vpop.xlane.xlu0 %1022
        %1024 = vmax.xlane.f32.xlu0 %v1015
        %v1025 = vpop.xlane.xlu0 %1024
        %1026 = vmax.xlane.f32.xlu0 %v1016
        %v1027 = vpop.xlane.xlu0 %1026
        %1028 = vmax.xlane.f32.xlu0 %v1017
        %v1029 = vpop.xlane.xlu0 %1028
        %1030 = vmax.xlane.f32.xlu0 %v1018
        %v1031 = vpop.xlane.xlu0 %1030
        %1032 = vmax.xlane.f32.xlu0 %v1019
        %v1033 = vpop.xlane.xlu0 %1032
        %1034 = vmax.xlane.f32.xlu0 %v1020
        %v1035 = vpop.xlane.xlu0 %1034
        %1036 = vmax.xlane.f32.xlu0 %v1021
        %v1037 = vpop.xlane.xlu0 %1036
        %v1038 = vadd.f32 %v870, %v1023
        %v1039 = vadd.f32 %v871, %v1025
        %v1040 = vadd.f32 %v872, %v1027
        %v1041 = vadd.f32 %v873, %v1029
        %v1042 = vadd.f32 %v874, %v1031
        %v1043 = vadd.f32 %v875, %v1033
        %v1044 = vadd.f32 %v876, %v1035
        %v1045 = vadd.f32 %v877, %v1037
        %vm1046 = vcmp.eq.f32.partialorder %v1014, %v1023
        %vm1047 = vcmp.eq.f32.partialorder %v1015, %v1025
        %vm1048 = vcmp.eq.f32.partialorder %v1016, %v1027
        %vm1049 = vcmp.eq.f32.partialorder %v1017, %v1029
        %vm1050 = vcmp.eq.f32.partialorder %v1018, %v1031
        %vm1051 = vcmp.eq.f32.partialorder %v1019, %v1033
        %vm1052 = vcmp.eq.f32.partialorder %v1020, %v1035
        %vm1053 = vcmp.eq.f32.partialorder %v1021, %v1037
        %v1054 = vsel %vm1046, %v350, 128
        %v1055 = vsel %vm1047, %v350, 128
        %v1056 = vsel %vm1048, %v350, 128
        %v1057 = vsel %vm1049, %v350, 128
        %v1058 = vsel %vm1050, %v350, 128
        %v1059 = vsel %vm1051, %v350, 128
        %v1060 = vsel %vm1052, %v350, 128
        %v1061 = vsel %vm1053, %v350, 128
        %v1062 = vand.u32 %v1054, 65535
        %v1063 = vshra.s32 %v1054, 16
        %v1064 = vcvt.s32.f32 %v1062
        %v1065 = vcvt.s32.f32 %v1063
        %1066 = vmin.xlane.f32.xlu0 %v1065
        %v1067 = vpop.xlane.xlu0 %1066
        %vm1068 = vcmp.eq.f32.partialorder %v1065, %v1067
        %v1069 = vsel %vm1068, %v1064, inf
        %1070 = vmin.xlane.f32.xlu0 %v1069
        %v1071 = vpop.xlane.xlu0 %1070
        %v1072 = vcvt.f32.s32 %v1071
        %v1073 = vcvt.f32.s32 %v1067
        %v1074 = vshll.u32 %v1073, 16
        %v1075 = vadd.s32 %v1074, %v1072
        %v1076 = vand.u32 %v1055, 65535
        %v1077 = vshra.s32 %v1055, 16
        %v1078 = vcvt.s32.f32 %v1076
        %v1079 = vcvt.s32.f32 %v1077
        %1080 = vmin.xlane.f32.xlu0 %v1079
        %v1081 = vpop.xlane.xlu0 %1080
        %vm1082 = vcmp.eq.f32.partialorder %v1079, %v1081
        %v1083 = vsel %vm1082, %v1078, inf
        %1084 = vmin.xlane.f32.xlu0 %v1083
        %v1085 = vpop.xlane.xlu0 %1084
        %v1086 = vcvt.f32.s32 %v1085
        %v1087 = vcvt.f32.s32 %v1081
        %v1088 = vshll.u32 %v1087, 16
        %v1089 = vadd.s32 %v1088, %v1086
        %v1090 = vand.u32 %v1056, 65535
        %v1091 = vshra.s32 %v1056, 16
        %v1092 = vcvt.s32.f32 %v1090
        %v1093 = vcvt.s32.f32 %v1091
        %1094 = vmin.xlane.f32.xlu0 %v1093
        %v1095 = vpop.xlane.xlu0 %1094
        %vm1096 = vcmp.eq.f32.partialorder %v1093, %v1095
        %v1097 = vsel %vm1096, %v1092, inf
        %1098 = vmin.xlane.f32.xlu0 %v1097
        %v1099 = vpop.xlane.xlu0 %1098
        %v1100 = vcvt.f32.s32 %v1099
        %v1101 = vcvt.f32.s32 %v1095
        %v1102 = vshll.u32 %v1101, 16
        %v1103 = vadd.s32 %v1102, %v1100
        %v1104 = vand.u32 %v1057, 65535
        %v1105 = vshra.s32 %v1057, 16
        %v1106 = vcvt.s32.f32 %v1104
        %v1107 = vcvt.s32.f32 %v1105
        %1108 = vmin.xlane.f32.xlu0 %v1107
        %v1109 = vpop.xlane.xlu0 %1108
        %vm1110 = vcmp.eq.f32.partialorder %v1107, %v1109
        %v1111 = vsel %vm1110, %v1106, inf
        %1112 = vmin.xlane.f32.xlu0 %v1111
        %v1113 = vpop.xlane.xlu0 %1112
        %v1114 = vcvt.f32.s32 %v1113
        %v1115 = vcvt.f32.s32 %v1109
        %v1116 = vshll.u32 %v1115, 16
        %v1117 = vadd.s32 %v1116, %v1114
        %v1118 = vand.u32 %v1058, 65535
        %v1119 = vshra.s32 %v1058, 16
        %v1120 = vcvt.s32.f32 %v1118
        %v1121 = vcvt.s32.f32 %v1119
        %1122 = vmin.xlane.f32.xlu0 %v1121
        %v1123 = vpop.xlane.xlu0 %1122
        %vm1124 = vcmp.eq.f32.partialorder %v1121, %v1123
        %v1125 = vsel %vm1124, %v1120, inf
        %1126 = vmin.xlane.f32.xlu0 %v1125
        %v1127 = vpop.xlane.xlu0 %1126
        %v1128 = vcvt.f32.s32 %v1127
        %v1129 = vcvt.f32.s32 %v1123
        %v1130 = vshll.u32 %v1129, 16
        %v1131 = vadd.s32 %v1130, %v1128
        %v1132 = vand.u32 %v1059, 65535
        %v1133 = vshra.s32 %v1059, 16
        %v1134 = vcvt.s32.f32 %v1132
        %v1135 = vcvt.s32.f32 %v1133
        %1136 = vmin.xlane.f32.xlu0 %v1135
        %v1137 = vpop.xlane.xlu0 %1136
        %vm1138 = vcmp.eq.f32.partialorder %v1135, %v1137
        %v1139 = vsel %vm1138, %v1134, inf
        %1140 = vmin.xlane.f32.xlu0 %v1139
        %v1141 = vpop.xlane.xlu0 %1140
        %v1142 = vcvt.f32.s32 %v1141
        %v1143 = vcvt.f32.s32 %v1137
        %v1144 = vshll.u32 %v1143, 16
        %v1145 = vadd.s32 %v1144, %v1142
        %v1146 = vand.u32 %v1060, 65535
        %v1147 = vshra.s32 %v1060, 16
        %v1148 = vcvt.s32.f32 %v1146
        %v1149 = vcvt.s32.f32 %v1147
        %1150 = vmin.xlane.f32.xlu0 %v1149
        %v1151 = vpop.xlane.xlu0 %1150
        %vm1152 = vcmp.eq.f32.partialorder %v1149, %v1151
        %v1153 = vsel %vm1152, %v1148, inf
        %1154 = vmin.xlane.f32.xlu0 %v1153
        %v1155 = vpop.xlane.xlu0 %1154
        %v1156 = vcvt.f32.s32 %v1155
        %v1157 = vcvt.f32.s32 %v1151
        %v1158 = vshll.u32 %v1157, 16
        %v1159 = vadd.s32 %v1158, %v1156
        %v1160 = vand.u32 %v1061, 65535
        %v1161 = vshra.s32 %v1061, 16
        %v1162 = vcvt.s32.f32 %v1160
        %v1163 = vcvt.s32.f32 %v1161
        %1164 = vmin.xlane.f32.xlu0 %v1163
        %v1165 = vpop.xlane.xlu0 %1164
        %vm1166 = vcmp.eq.f32.partialorder %v1163, %v1165
        %v1167 = vsel %vm1166, %v1162, inf
        %1168 = vmin.xlane.f32.xlu0 %v1167
        %v1169 = vpop.xlane.xlu0 %1168
        %v1170 = vcvt.f32.s32 %v1169
        %v1171 = vcvt.f32.s32 %v1165
        %v1172 = vshll.u32 %v1171, 16
        %v1173 = vadd.s32 %v1172, %v1170
        %vm1174 = vcmp.eq.s32.totalorder %v350, %v1075
        %vm1175 = vcmp.eq.s32.totalorder %v350, %v1089
        %vm1176 = vcmp.eq.s32.totalorder %v350, %v1103
        %vm1177 = vcmp.eq.s32.totalorder %v350, %v1117
        %vm1178 = vcmp.eq.s32.totalorder %v350, %v1131
        %vm1179 = vcmp.eq.s32.totalorder %v350, %v1145
        %vm1180 = vcmp.eq.s32.totalorder %v350, %v1159
        %vm1181 = vcmp.eq.s32.totalorder %v350, %v1173
        %v1182 = vsel %vm1174, -inf, %v1014
        %v1183 = vsel %vm1175, -inf, %v1015
        %v1184 = vsel %vm1176, -inf, %v1016
        %v1185 = vsel %vm1177, -inf, %v1017
        %v1186 = vsel %vm1178, -inf, %v1018
        %v1187 = vsel %vm1179, -inf, %v1019
        %v1188 = vsel %vm1180, -inf, %v1020
        %v1189 = vsel %vm1181, -inf, %v1021
        %1190 = vmax.xlane.f32.xlu0 %v1182
        %v1191 = vpop.xlane.xlu0 %1190
        %1192 = vmax.xlane.f32.xlu0 %v1183
        %v1193 = vpop.xlane.xlu0 %1192
        %1194 = vmax.xlane.f32.xlu0 %v1184
        %v1195 = vpop.xlane.xlu0 %1194
        %1196 = vmax.xlane.f32.xlu0 %v1185
        %v1197 = vpop.xlane.xlu0 %1196
        %1198 = vmax.xlane.f32.xlu0 %v1186
        %v1199 = vpop.xlane.xlu0 %1198
        %1200 = vmax.xlane.f32.xlu0 %v1187
        %v1201 = vpop.xlane.xlu0 %1200
        %1202 = vmax.xlane.f32.xlu0 %v1188
        %v1203 = vpop.xlane.xlu0 %1202
        %1204 = vmax.xlane.f32.xlu0 %v1189
        %v1205 = vpop.xlane.xlu0 %1204
        %v1206 = vadd.f32 %v1038, %v1191
        %v1207 = vadd.f32 %v1039, %v1193
        %v1208 = vadd.f32 %v1040, %v1195
        %v1209 = vadd.f32 %v1041, %v1197
        %v1210 = vadd.f32 %v1042, %v1199
        %v1211 = vadd.f32 %v1043, %v1201
        %v1212 = vadd.f32 %v1044, %v1203
        %v1213 = vadd.f32 %v1045, %v1205
        %v1214 = vadd.f32 %v1206, %v1207
        %v1215 = vadd.f32 %v1214, %v1208
        %v1216 = vadd.f32 %v1215, %v1209
        %v1217 = vadd.f32 %v1216, %v1210
        %v1218 = vadd.f32 %v1217, %v1211
        %v1219 = vadd.f32 %v1218, %v1212
        %v1220 = vadd.f32 %v1219, %v1213
        %v1221 = vrot.slane %v1220, 4
        %v1222 = vadd.f32 %v1220, %v1221
        %v1223 = vrot.slane %v1222, 2
        %v1224 = vadd.f32 %v1222, %v1223
        %v1225 = vrot.slane %v1224, 1
        %v1226 = vadd.f32 %v1224, %v1225
        %vm1227 = vcmask 8200
        %1228 = vst.msk [vmem:[%s135] sm:$0x1] %vm1227, %v1226
        %s1229 = scalar_lea.vmem %s1, 64
        %v1230 = vld [vmem:[%s1229] sm:$0xff]
        %v1231 = vld [vmem:[%s1229 + $0x8] sm:$0xff]
        %v1232 = vld [vmem:[%s1229 + $0x10] sm:$0xff]
        %v1233 = vld [vmem:[%s1229 + $0x18] sm:$0xff]
        %v1234 = vmul.f32 %v1230, %v1230
        %v1235 = vmul.f32 %v1231, %v1231
        %v1236 = vmul.f32 %v1232, %v1232
        %v1237 = vmul.f32 %v1233, %v1233
        %v1238 = vadd.f32 %v1234, %v1235
        %v1239 = vadd.f32 %v1238, %v1236
        %v1240 = vadd.f32 %v1239, %v1237
        %v1241 = vrot.slane %v1240, 4
        %v1242 = vadd.f32 %v1240, %v1241
        %v1243 = vrot.slane %v1242, 2
        %v1244 = vadd.f32 %v1242, %v1243
        %v1245 = vrot.slane %v1244, 1
        %v1246 = vadd.f32 %v1244, %v1245
        %v1247 = vrsqrt.pop %v1246
        %v1248 = vmul.f32 %v1230, %v1247
        %v1249 = vmul.f32 %v1231, %v1247
        %v1250 = vmul.f32 %v1232, %v1247
        %v1251 = vmul.f32 %v1233, %v1247
        %1252 = vmatprep.subr.mxu0 0.0
        %1253 = vmatpush1.msra.mxu0 %v1248
        %1254 = vmatprep.subr.mxu0 0.0
        %1255 = vmatpush1.msra.mxu0 %v1249
        %1256 = vmatprep.subr.mxu0 0.0
        %1257 = vmatpush1.msra.mxu0 %v1250
        %1258 = vmatprep.subr.mxu0 0.0
        %1259 = vmatpush1.msra.mxu0 %v1251
        %1260 = vmatprep.subr.mxu0 0.0
        %1261 = vmatpush1.msra.mxu0 0.0
        %1262 = vmatprep.subr.mxu0 0.0
        %1263 = vmatpush1.msra.mxu0 0.0
        %1264 = vmatprep.subr.mxu0 0.0
        %1265 = vmatpush1.msra.mxu0 0.0
        %1266 = vmatprep.subr.mxu0 0.0
        %1267 = vmatpush1.msra.mxu0 0.0
        %1268 = vmatprep.subr.mxu0 0.0
        %1269 = vmatpush1.msra.mxu0 0.0
        %1270 = vmatprep.subr.mxu0 0.0
        %1271 = vmatpush1.msra.mxu0 0.0
        %1272 = vmatprep.subr.mxu0 0.0
        %1273 = vmatpush1.msra.mxu0 0.0
        %1274 = vmatprep.subr.mxu0 0.0
        %1275 = vmatpush1.msra.mxu0 0.0
        %1276 = vmatprep.subr.mxu0 0.0
        %1277 = vmatpush1.msra.mxu0 0.0
        %1278 = vmatprep.subr.mxu0 0.0
        %1279 = vmatpush1.msra.mxu0 0.0
        %1280 = vmatprep.subr.mxu0 0.0
        %1281 = vmatpush1.msra.mxu0 0.0
        %1282 = vmatprep.subr.mxu0 0.0
        %1283 = vmatpush1.msra.mxu0 0.0
        %1284 = vmatprep.subr.mxu0 0.0
        %1285 = vmatpush1.msra.mxu0 0.0
        %1286 = vmatprep.subr.mxu0 0.0
        %1287 = vmatpush1.msra.mxu0 0.0
        %1288 = vmatprep.subr.mxu0 0.0
        %1289 = vmatpush1.msra.mxu0 0.0
        %1290 = vmatprep.subr.mxu0 0.0
        %1291 = vmatpush1.msra.mxu0 0.0
        %1292 = vmatprep.subr.mxu0 0.0
        %1293 = vmatpush1.msra.mxu0 0.0
        %1294 = vmatprep.subr.mxu0 0.0
        %1295 = vmatpush1.msra.mxu0 0.0
        %1296 = vmatprep.subr.mxu0 0.0
        %1297 = vmatpush1.msra.mxu0 0.0
        %1298 = vmatprep.subr.mxu0 0.0
        %1299 = vmatpush1.msra.mxu0 0.0
        %1300 = vmatprep.subr.mxu0 0.0
        %1301 = vmatpush1.msra.mxu0 0.0
        %1302 = vmatprep.subr.mxu0 0.0
        %1303 = vmatpush1.msra.mxu0 0.0
        %1304 = vmatprep.subr.mxu0 0.0
        %1305 = vmatpush1.msra.mxu0 0.0
        %1306 = vmatprep.subr.mxu0 0.0
        %1307 = vmatpush1.msra.mxu0 0.0
        %1308 = vmatprep.subr.mxu0 0.0
        %1309 = vmatpush1.msra.mxu0 0.0
        %1310 = vmatprep.subr.mxu0 0.0
        %1311 = vmatpush1.msra.mxu0 0.0
        %1312 = vmatprep.subr.mxu0 0.0
        %1313 = vmatpush1.msra.mxu0 0.0
        %1314 = vmatprep.subr.mxu0 0.0
        %1315 = vmatpush1.msra.mxu0 0.0
        %1316 = vmatprep.mubr.f32.mxu0 0.0
        %1317 = vmatmul.mubr.f32.gmra.mrb[0].mxu0 %v221
        %v1318 = vpop.f32.mrb[0].mxu0
        %v1319 = vadd.f32 0.0, %v1318
        %v1320 = vpop.f32.mrb[0].mxu0
        %1321 = vmatprep.mubr.f32.mxu0 0.0
        %1322 = vmatmul.mubr.f32.gmra.mrb[0].mxu0 %v224
        %v1323 = vpop.f32.mrb[0].mxu0
        %v1324 = vadd.f32 0.0, %v1323
        %v1325 = vpop.f32.mrb[0].mxu0
        %1326 = vmatprep.mubr.f32.mxu0 0.0
        %1327 = vmatmul.mubr.f32.gmra.mrb[0].mxu0 %v227
        %v1328 = vpop.f32.mrb[0].mxu0
        %v1329 = vadd.f32 0.0, %v1328
        %v1330 = vpop.f32.mrb[0].mxu0
        %1331 = vmatprep.mubr.f32.mxu0 0.0
        %1332 = vmatmul.mubr.f32.gmra.mrb[0].mxu0 %v230
        %v1333 = vpop.f32.mrb[0].mxu0
        %v1334 = vadd.f32 0.0, %v1333
        %v1335 = vpop.f32.mrb[0].mxu0
        %1336 = vmatprep.mubr.f32.mxu0 0.0
        %1337 = vmatmul.mubr.f32.gmra.mrb[0].mxu0 %v233
        %v1338 = vpop.f32.mrb[0].mxu0
        %v1339 = vadd.f32 0.0, %v1338
        %v1340 = vpop.f32.mrb[0].mxu0
        %1341 = vmatprep.mubr.f32.mxu0 0.0
        %1342 = vmatmul.mubr.f32.gmra.mrb[0].mxu0 %v236
        %v1343 = vpop.f32.mrb[0].mxu0
        %v1344 = vadd.f32 0.0, %v1343
        %v1345 = vpop.f32.mrb[0].mxu0
        %1346 = vmatprep.mubr.f32.mxu0 0.0
        %1347 = vmatmul.mubr.f32.gmra.mrb[0].mxu0 %v239
        %v1348 = vpop.f32.mrb[0].mxu0
        %v1349 = vadd.f32 0.0, %v1348
        %v1350 = vpop.f32.mrb[0].mxu0
        %1351 = vmatprep.mubr.f32.mxu0 0.0
        %1352 = vmatmul.mubr.f32.gmra.mrb[0].mxu0 %v242
        %v1353 = vpop.f32.mrb[0].mxu0
        %v1354 = vadd.f32 0.0, %v1353
        %v1355 = vpop.f32.mrb[0].mxu0
        %1356 = vdwg.mxu0
        %1357 = vmax.xlane.f32.xlu0 %v1319
        %v1358 = vpop.xlane.xlu0 %1357
        %1359 = vmax.xlane.f32.xlu0 %v1324
        %v1360 = vpop.xlane.xlu0 %1359
        %1361 = vmax.xlane.f32.xlu0 %v1329
        %v1362 = vpop.xlane.xlu0 %1361
        %1363 = vmax.xlane.f32.xlu0 %v1334
        %v1364 = vpop.xlane.xlu0 %1363
        %1365 = vmax.xlane.f32.xlu0 %v1339
        %v1366 = vpop.xlane.xlu0 %1365
        %1367 = vmax.xlane.f32.xlu0 %v1344
        %v1368 = vpop.xlane.xlu0 %1367
        %1369 = vmax.xlane.f32.xlu0 %v1349
        %v1370 = vpop.xlane.xlu0 %1369
        %1371 = vmax.xlane.f32.xlu0 %v1354
        %v1372 = vpop.xlane.xlu0 %1371
        %v1373 = vadd.f32 %v1358, 0.0
        %v1374 = vadd.f32 %v1360, 0.0
        %v1375 = vadd.f32 %v1362, 0.0
        %v1376 = vadd.f32 %v1364, 0.0
        %v1377 = vadd.f32 %v1366, 0.0
        %v1378 = vadd.f32 %v1368, 0.0
        %v1379 = vadd.f32 %v1370, 0.0
        %v1380 = vadd.f32 %v1372, 0.0
        %vm1381 = vcmp.eq.f32.partialorder %v1319, %v1358
        %vm1382 = vcmp.eq.f32.partialorder %v1324, %v1360
        %vm1383 = vcmp.eq.f32.partialorder %v1329, %v1362
        %vm1384 = vcmp.eq.f32.partialorder %v1334, %v1364
        %vm1385 = vcmp.eq.f32.partialorder %v1339, %v1366
        %vm1386 = vcmp.eq.f32.partialorder %v1344, %v1368
        %vm1387 = vcmp.eq.f32.partialorder %v1349, %v1370
        %vm1388 = vcmp.eq.f32.partialorder %v1354, %v1372
        %v1389 = vsel %vm1381, %v350, 128
        %v1390 = vsel %vm1382, %v350, 128
        %v1391 = vsel %vm1383, %v350, 128
        %v1392 = vsel %vm1384, %v350, 128
        %v1393 = vsel %vm1385, %v350, 128
        %v1394 = vsel %vm1386, %v350, 128
        %v1395 = vsel %vm1387, %v350, 128
        %v1396 = vsel %vm1388, %v350, 128
        %v1397 = vand.u32 %v1389, 65535
        %v1398 = vshra.s32 %v1389, 16
        %v1399 = vcvt.s32.f32 %v1397
        %v1400 = vcvt.s32.f32 %v1398
        %1401 = vmin.xlane.f32.xlu0 %v1400
        %v1402 = vpop.xlane.xlu0 %1401
        %vm1403 = vcmp.eq.f32.partialorder %v1400, %v1402
        %v1404 = vsel %vm1403, %v1399, inf
        %1405 = vmin.xlane.f32.xlu0 %v1404
        %v1406 = vpop.xlane.xlu0 %1405
        %v1407 = vcvt.f32.s32 %v1406
        %v1408 = vcvt.f32.s32 %v1402
        %v1409 = vshll.u32 %v1408, 16
        %v1410 = vadd.s32 %v1409, %v1407
        %v1411 = vand.u32 %v1390, 65535
        %v1412 = vshra.s32 %v1390, 16
        %v1413 = vcvt.s32.f32 %v1411
        %v1414 = vcvt.s32.f32 %v1412
        %1415 = vmin.xlane.f32.xlu0 %v1414
        %v1416 = vpop.xlane.xlu0 %1415
        %vm1417 = vcmp.eq.f32.partialorder %v1414, %v1416
        %v1418 = vsel %vm1417, %v1413, inf
        %1419 = vmin.xlane.f32.xlu0 %v1418
        %v1420 = vpop.xlane.xlu0 %1419
        %v1421 = vcvt.f32.s32 %v1420
        %v1422 = vcvt.f32.s32 %v1416
        %v1423 = vshll.u32 %v1422, 16
        %v1424 = vadd.s32 %v1423, %v1421
        %v1425 = vand.u32 %v1391, 65535
        %v1426 = vshra.s32 %v1391, 16
        %v1427 = vcvt.s32.f32 %v1425
        %v1428 = vcvt.s32.f32 %v1426
        %1429 = vmin.xlane.f32.xlu0 %v1428
        %v1430 = vpop.xlane.xlu0 %1429
        %vm1431 = vcmp.eq.f32.partialorder %v1428, %v1430
        %v1432 = vsel %vm1431, %v1427, inf
        %1433 = vmin.xlane.f32.xlu0 %v1432
        %v1434 = vpop.xlane.xlu0 %1433
        %v1435 = vcvt.f32.s32 %v1434
        %v1436 = vcvt.f32.s32 %v1430
        %v1437 = vshll.u32 %v1436, 16
        %v1438 = vadd.s32 %v1437, %v1435
        %v1439 = vand.u32 %v1392, 65535
        %v1440 = vshra.s32 %v1392, 16
        %v1441 = vcvt.s32.f32 %v1439
        %v1442 = vcvt.s32.f32 %v1440
        %1443 = vmin.xlane.f32.xlu0 %v1442
        %v1444 = vpop.xlane.xlu0 %1443
        %vm1445 = vcmp.eq.f32.partialorder %v1442, %v1444
        %v1446 = vsel %vm1445, %v1441, inf
        %1447 = vmin.xlane.f32.xlu0 %v1446
        %v1448 = vpop.xlane.xlu0 %1447
        %v1449 = vcvt.f32.s32 %v1448
        %v1450 = vcvt.f32.s32 %v1444
        %v1451 = vshll.u32 %v1450, 16
        %v1452 = vadd.s32 %v1451, %v1449
        %v1453 = vand.u32 %v1393, 65535
        %v1454 = vshra.s32 %v1393, 16
        %v1455 = vcvt.s32.f32 %v1453
        %v1456 = vcvt.s32.f32 %v1454
        %1457 = vmin.xlane.f32.xlu0 %v1456
        %v1458 = vpop.xlane.xlu0 %1457
        %vm1459 = vcmp.eq.f32.partialorder %v1456, %v1458
        %v1460 = vsel %vm1459, %v1455, inf
        %1461 = vmin.xlane.f32.xlu0 %v1460
        %v1462 = vpop.xlane.xlu0 %1461
        %v1463 = vcvt.f32.s32 %v1462
        %v1464 = vcvt.f32.s32 %v1458
        %v1465 = vshll.u32 %v1464, 16
        %v1466 = vadd.s32 %v1465, %v1463
        %v1467 = vand.u32 %v1394, 65535
        %v1468 = vshra.s32 %v1394, 16
        %v1469 = vcvt.s32.f32 %v1467
        %v1470 = vcvt.s32.f32 %v1468
        %1471 = vmin.xlane.f32.xlu0 %v1470
        %v1472 = vpop.xlane.xlu0 %1471
        %vm1473 = vcmp.eq.f32.partialorder %v1470, %v1472
        %v1474 = vsel %vm1473, %v1469, inf
        %1475 = vmin.xlane.f32.xlu0 %v1474
        %v1476 = vpop.xlane.xlu0 %1475
        %v1477 = vcvt.f32.s32 %v1476
        %v1478 = vcvt.f32.s32 %v1472
        %v1479 = vshll.u32 %v1478, 16
        %v1480 = vadd.s32 %v1479, %v1477
        %v1481 = vand.u32 %v1395, 65535
        %v1482 = vshra.s32 %v1395, 16
        %v1483 = vcvt.s32.f32 %v1481
        %v1484 = vcvt.s32.f32 %v1482
        %1485 = vmin.xlane.f32.xlu0 %v1484
        %v1486 = vpop.xlane.xlu0 %1485
        %vm1487 = vcmp.eq.f32.partialorder %v1484, %v1486
        %v1488 = vsel %vm1487, %v1483, inf
        %1489 = vmin.xlane.f32.xlu0 %v1488
        %v1490 = vpop.xlane.xlu0 %1489
        %v1491 = vcvt.f32.s32 %v1490
        %v1492 = vcvt.f32.s32 %v1486
        %v1493 = vshll.u32 %v1492, 16
        %v1494 = vadd.s32 %v1493, %v1491
        %v1495 = vand.u32 %v1396, 65535
        %v1496 = vshra.s32 %v1396, 16
        %v1497 = vcvt.s32.f32 %v1495
        %v1498 = vcvt.s32.f32 %v1496
        %1499 = vmin.xlane.f32.xlu0 %v1498
        %v1500 = vpop.xlane.xlu0 %1499
        %vm1501 = vcmp.eq.f32.partialorder %v1498, %v1500
        %v1502 = vsel %vm1501, %v1497, inf
        %1503 = vmin.xlane.f32.xlu0 %v1502
        %v1504 = vpop.xlane.xlu0 %1503
        %v1505 = vcvt.f32.s32 %v1504
        %v1506 = vcvt.f32.s32 %v1500
        %v1507 = vshll.u32 %v1506, 16
        %v1508 = vadd.s32 %v1507, %v1505
        %vm1509 = vcmp.eq.s32.totalorder %v350, %v1410
        %vm1510 = vcmp.eq.s32.totalorder %v350, %v1424
        %vm1511 = vcmp.eq.s32.totalorder %v350, %v1438
        %vm1512 = vcmp.eq.s32.totalorder %v350, %v1452
        %vm1513 = vcmp.eq.s32.totalorder %v350, %v1466
        %vm1514 = vcmp.eq.s32.totalorder %v350, %v1480
        %vm1515 = vcmp.eq.s32.totalorder %v350, %v1494
        %vm1516 = vcmp.eq.s32.totalorder %v350, %v1508
        %v1517 = vsel %vm1509, -inf, %v1319
        %v1518 = vsel %vm1510, -inf, %v1324
        %v1519 = vsel %vm1511, -inf, %v1329
        %v1520 = vsel %vm1512, -inf, %v1334
        %v1521 = vsel %vm1513, -inf, %v1339
        %v1522 = vsel %vm1514, -inf, %v1344
        %v1523 = vsel %vm1515, -inf, %v1349
        %v1524 = vsel %vm1516, -inf, %v1354
        %1525 = vmax.xlane.f32.xlu0 %v1517
        %v1526 = vpop.xlane.xlu0 %1525
        %1527 = vmax.xlane.f32.xlu0 %v1518
        %v1528 = vpop.xlane.xlu0 %1527
        %1529 = vmax.xlane.f32.xlu0 %v1519
        %v1530 = vpop.xlane.xlu0 %1529
        %1531 = vmax.xlane.f32.xlu0 %v1520
        %v1532 = vpop.xlane.xlu0 %1531
        %1533 = vmax.xlane.f32.xlu0 %v1521
        %v1534 = vpop.xlane.xlu0 %1533
        %1535 = vmax.xlane.f32.xlu0 %v1522
        %v1536 = vpop.xlane.xlu0 %1535
        %1537 = vmax.xlane.f32.xlu0 %v1523
        %v1538 = vpop.xlane.xlu0 %1537
        %1539 = vmax.xlane.f32.xlu0 %v1524
        %v1540 = vpop.xlane.xlu0 %1539
        %v1541 = vadd.f32 %v1373, %v1526
        %v1542 = vadd.f32 %v1374, %v1528
        %v1543 = vadd.f32 %v1375, %v1530
        %v1544 = vadd.f32 %v1376, %v1532
        %v1545 = vadd.f32 %v1377, %v1534
        %v1546 = vadd.f32 %v1378, %v1536
        %v1547 = vadd.f32 %v1379, %v1538
        %v1548 = vadd.f32 %v1380, %v1540
        %vm1549 = vcmp.eq.f32.partialorder %v1517, %v1526
        %vm1550 = vcmp.eq.f32.partialorder %v1518, %v1528
        %vm1551 = vcmp.eq.f32.partialorder %v1519, %v1530
        %vm1552 = vcmp.eq.f32.partialorder %v1520, %v1532
        %vm1553 = vcmp.eq.f32.partialorder %v1521, %v1534
        %vm1554 = vcmp.eq.f32.partialorder %v1522, %v1536
        %vm1555 = vcmp.eq.f32.partialorder %v1523, %v1538
        %vm1556 = vcmp.eq.f32.partialorder %v1524, %v1540
        %v1557 = vsel %vm1549, %v350, 128
        %v1558 = vsel %vm1550, %v350, 128
        %v1559 = vsel %vm1551, %v350, 128
        %v1560 = vsel %vm1552, %v350, 128
        %v1561 = vsel %vm1553, %v350, 128
        %v1562 = vsel %vm1554, %v350, 128
        %v1563 = vsel %vm1555, %v350, 128
        %v1564 = vsel %vm1556, %v350, 128
        %v1565 = vand.u32 %v1557, 65535
        %v1566 = vshra.s32 %v1557, 16
        %v1567 = vcvt.s32.f32 %v1565
        %v1568 = vcvt.s32.f32 %v1566
        %1569 = vmin.xlane.f32.xlu0 %v1568
        %v1570 = vpop.xlane.xlu0 %1569
        %vm1571 = vcmp.eq.f32.partialorder %v1568, %v1570
        %v1572 = vsel %vm1571, %v1567, inf
        %1573 = vmin.xlane.f32.xlu0 %v1572
        %v1574 = vpop.xlane.xlu0 %1573
        %v1575 = vcvt.f32.s32 %v1574
        %v1576 = vcvt.f32.s32 %v1570
        %v1577 = vshll.u32 %v1576, 16
        %v1578 = vadd.s32 %v1577, %v1575
        %v1579 = vand.u32 %v1558, 65535
        %v1580 = vshra.s32 %v1558, 16
        %v1581 = vcvt.s32.f32 %v1579
        %v1582 = vcvt.s32.f32 %v1580
        %1583 = vmin.xlane.f32.xlu0 %v1582
        %v1584 = vpop.xlane.xlu0 %1583
        %vm1585 = vcmp.eq.f32.partialorder %v1582, %v1584
        %v1586 = vsel %vm1585, %v1581, inf
        %1587 = vmin.xlane.f32.xlu0 %v1586
        %v1588 = vpop.xlane.xlu0 %1587
        %v1589 = vcvt.f32.s32 %v1588
        %v1590 = vcvt.f32.s32 %v1584
        %v1591 = vshll.u32 %v1590, 16
        %v1592 = vadd.s32 %v1591, %v1589
        %v1593 = vand.u32 %v1559, 65535
        %v1594 = vshra.s32 %v1559, 16
        %v1595 = vcvt.s32.f32 %v1593
        %v1596 = vcvt.s32.f32 %v1594
        %1597 = vmin.xlane.f32.xlu0 %v1596
        %v1598 = vpop.xlane.xlu0 %1597
        %vm1599 = vcmp.eq.f32.partialorder %v1596, %v1598
        %v1600 = vsel %vm1599, %v1595, inf
        %1601 = vmin.xlane.f32.xlu0 %v1600
        %v1602 = vpop.xlane.xlu0 %1601
        %v1603 = vcvt.f32.s32 %v1602
        %v1604 = vcvt.f32.s32 %v1598
        %v1605 = vshll.u32 %v1604, 16
        %v1606 = vadd.s32 %v1605, %v1603
        %v1607 = vand.u32 %v1560, 65535
        %v1608 = vshra.s32 %v1560, 16
        %v1609 = vcvt.s32.f32 %v1607
        %v1610 = vcvt.s32.f32 %v1608
        %1611 = vmin.xlane.f32.xlu0 %v1610
        %v1612 = vpop.xlane.xlu0 %1611
        %vm1613 = vcmp.eq.f32.partialorder %v1610, %v1612
        %v1614 = vsel %vm1613, %v1609, inf
        %1615 = vmin.xlane.f32.xlu0 %v1614
        %v1616 = vpop.xlane.xlu0 %1615
        %v1617 = vcvt.f32.s32 %v1616
        %v1618 = vcvt.f32.s32 %v1612
        %v1619 = vshll.u32 %v1618, 16
        %v1620 = vadd.s32 %v1619, %v1617
        %v1621 = vand.u32 %v1561, 65535
        %v1622 = vshra.s32 %v1561, 16
        %v1623 = vcvt.s32.f32 %v1621
        %v1624 = vcvt.s32.f32 %v1622
        %1625 = vmin.xlane.f32.xlu0 %v1624
        %v1626 = vpop.xlane.xlu0 %1625
        %vm1627 = vcmp.eq.f32.partialorder %v1624, %v1626
        %v1628 = vsel %vm1627, %v1623, inf
        %1629 = vmin.xlane.f32.xlu0 %v1628
        %v1630 = vpop.xlane.xlu0 %1629
        %v1631 = vcvt.f32.s32 %v1630
        %v1632 = vcvt.f32.s32 %v1626
        %v1633 = vshll.u32 %v1632, 16
        %v1634 = vadd.s32 %v1633, %v1631
        %v1635 = vand.u32 %v1562, 65535
        %v1636 = vshra.s32 %v1562, 16
        %v1637 = vcvt.s32.f32 %v1635
        %v1638 = vcvt.s32.f32 %v1636
        %1639 = vmin.xlane.f32.xlu0 %v1638
        %v1640 = vpop.xlane.xlu0 %1639
        %vm1641 = vcmp.eq.f32.partialorder %v1638, %v1640
        %v1642 = vsel %vm1641, %v1637, inf
        %1643 = vmin.xlane.f32.xlu0 %v1642
        %v1644 = vpop.xlane.xlu0 %1643
        %v1645 = vcvt.f32.s32 %v1644
        %v1646 = vcvt.f32.s32 %v1640
        %v1647 = vshll.u32 %v1646, 16
        %v1648 = vadd.s32 %v1647, %v1645
        %v1649 = vand.u32 %v1563, 65535
        %v1650 = vshra.s32 %v1563, 16
        %v1651 = vcvt.s32.f32 %v1649
        %v1652 = vcvt.s32.f32 %v1650
        %1653 = vmin.xlane.f32.xlu0 %v1652
        %v1654 = vpop.xlane.xlu0 %1653
        %vm1655 = vcmp.eq.f32.partialorder %v1652, %v1654
        %v1656 = vsel %vm1655, %v1651, inf
        %1657 = vmin.xlane.f32.xlu0 %v1656
        %v1658 = vpop.xlane.xlu0 %1657
        %v1659 = vcvt.f32.s32 %v1658
        %v1660 = vcvt.f32.s32 %v1654
        %v1661 = vshll.u32 %v1660, 16
        %v1662 = vadd.s32 %v1661, %v1659
        %v1663 = vand.u32 %v1564, 65535
        %v1664 = vshra.s32 %v1564, 16
        %v1665 = vcvt.s32.f32 %v1663
        %v1666 = vcvt.s32.f32 %v1664
        %1667 = vmin.xlane.f32.xlu0 %v1666
        %v1668 = vpop.xlane.xlu0 %1667
        %vm1669 = vcmp.eq.f32.partialorder %v1666, %v1668
        %v1670 = vsel %vm1669, %v1665, inf
        %1671 = vmin.xlane.f32.xlu0 %v1670
        %v1672 = vpop.xlane.xlu0 %1671
        %v1673 = vcvt.f32.s32 %v1672
        %v1674 = vcvt.f32.s32 %v1668
        %v1675 = vshll.u32 %v1674, 16
        %v1676 = vadd.s32 %v1675, %v1673
        %vm1677 = vcmp.eq.s32.totalorder %v350, %v1578
        %vm1678 = vcmp.eq.s32.totalorder %v350, %v1592
        %vm1679 = vcmp.eq.s32.totalorder %v350, %v1606
        %vm1680 = vcmp.eq.s32.totalorder %v350, %v1620
        %vm1681 = vcmp.eq.s32.totalorder %v350, %v1634
        %vm1682 = vcmp.eq.s32.totalorder %v350, %v1648
        %vm1683 = vcmp.eq.s32.totalorder %v350, %v1662
        %vm1684 = vcmp.eq.s32.totalorder %v350, %v1676
        %v1685 = vsel %vm1677, -inf, %v1517
        %v1686 = vsel %vm1678, -inf, %v1518
        %v1687 = vsel %vm1679, -inf, %v1519
        %v1688 = vsel %vm1680, -inf, %v1520
        %v1689 = vsel %vm1681, -inf, %v1521
        %v1690 = vsel %vm1682, -inf, %v1522
        %v1691 = vsel %vm1683, -inf, %v1523
        %v1692 = vsel %vm1684, -inf, %v1524
        %1693 = vmax.xlane.f32.xlu0 %v1685
        %v1694 = vpop.xlane.xlu0 %1693
        %1695 = vmax.xlane.f32.xlu0 %v1686
        %v1696 = vpop.xlane.xlu0 %1695
        %1697 = vmax.xlane.f32.xlu0 %v1687
        %v1698 = vpop.xlane.xlu0 %1697
        %1699 = vmax.xlane.f32.xlu0 %v1688
        %v1700 = vpop.xlane.xlu0 %1699
        %1701 = vmax.xlane.f32.xlu0 %v1689
        %v1702 = vpop.xlane.xlu0 %1701
        %1703 = vmax.xlane.f32.xlu0 %v1690
        %v1704 = vpop.xlane.xlu0 %1703
        %1705 = vmax.xlane.f32.xlu0 %v1691
        %v1706 = vpop.xlane.xlu0 %1705
        %1707 = vmax.xlane.f32.xlu0 %v1692
        %v1708 = vpop.xlane.xlu0 %1707
        %v1709 = vadd.f32 %v1541, %v1694
        %v1710 = vadd.f32 %v1542, %v1696
        %v1711 = vadd.f32 %v1543, %v1698
        %v1712 = vadd.f32 %v1544, %v1700
        %v1713 = vadd.f32 %v1545, %v1702
        %v1714 = vadd.f32 %v1546, %v1704
        %v1715 = vadd.f32 %v1547, %v1706
        %v1716 = vadd.f32 %v1548, %v1708
        %v1717 = vadd.f32 %v1709, %v1710
        %v1718 = vadd.f32 %v1717, %v1711
        %v1719 = vadd.f32 %v1718, %v1712
        %v1720 = vadd.f32 %v1719, %v1713
        %v1721 = vadd.f32 %v1720, %v1714
        %v1722 = vadd.f32 %v1721, %v1715
        %v1723 = vadd.f32 %v1722, %v1716
        %v1724 = vrot.slane %v1723, 4
        %v1725 = vadd.f32 %v1723, %v1724
        %v1726 = vrot.slane %v1725, 2
        %v1727 = vadd.f32 %v1725, %v1726
        %v1728 = vrot.slane %v1727, 1
        %v1729 = vadd.f32 %v1727, %v1728
        %vm1730 = vcmask 16400
        %1731 = vst.msk [vmem:[%s135] sm:$0x1] %vm1730, %v1729
        %s1732 = scalar_lea.vmem %s1, 96
        %v1733 = vld [vmem:[%s1732] sm:$0xff]
        %v1734 = vld [vmem:[%s1732 + $0x8] sm:$0xff]
        %v1735 = vld [vmem:[%s1732 + $0x10] sm:$0xff]
        %v1736 = vld [vmem:[%s1732 + $0x18] sm:$0xff]
        %v1737 = vmul.f32 %v1733, %v1733
        %v1738 = vmul.f32 %v1734, %v1734
        %v1739 = vmul.f32 %v1735, %v1735
        %v1740 = vmul.f32 %v1736, %v1736
        %v1741 = vadd.f32 %v1737, %v1738
        %v1742 = vadd.f32 %v1741, %v1739
        %v1743 = vadd.f32 %v1742, %v1740
        %v1744 = vrot.slane %v1743, 4
        %v1745 = vadd.f32 %v1743, %v1744
        %v1746 = vrot.slane %v1745, 2
        %v1747 = vadd.f32 %v1745, %v1746
        %v1748 = vrot.slane %v1747, 1
        %v1749 = vadd.f32 %v1747, %v1748
        %v1750 = vrsqrt.pop %v1749
        %v1751 = vmul.f32 %v1733, %v1750
        %v1752 = vmul.f32 %v1734, %v1750
        %v1753 = vmul.f32 %v1735, %v1750
        %v1754 = vmul.f32 %v1736, %v1750
        %1755 = vmatprep.subr.mxu0 0.0
        %1756 = vmatpush1.msra.mxu0 %v1751
        %1757 = vmatprep.subr.mxu0 0.0
        %1758 = vmatpush1.msra.mxu0 %v1752
        %1759 = vmatprep.subr.mxu0 0.0
        %1760 = vmatpush1.msra.mxu0 %v1753
        %1761 = vmatprep.subr.mxu0 0.0
        %1762 = vmatpush1.msra.mxu0 %v1754
        %1763 = vmatprep.subr.mxu0 0.0
        %1764 = vmatpush1.msra.mxu0 0.0
        %1765 = vmatprep.subr.mxu0 0.0
        %1766 = vmatpush1.msra.mxu0 0.0
        %1767 = vmatprep.subr.mxu0 0.0
        %1768 = vmatpush1.msra.mxu0 0.0
        %1769 = vmatprep.subr.mxu0 0.0
        %1770 = vmatpush1.msra.mxu0 0.0
        %1771 = vmatprep.subr.mxu0 0.0
        %1772 = vmatpush1.msra.mxu0 0.0
        %1773 = vmatprep.subr.mxu0 0.0
        %1774 = vmatpush1.msra.mxu0 0.0
        %1775 = vmatprep.subr.mxu0 0.0
        %1776 = vmatpush1.msra.mxu0 0.0
        %1777 = vmatprep.subr.mxu0 0.0
        %1778 = vmatpush1.msra.mxu0 0.0
        %1779 = vmatprep.subr.mxu0 0.0
        %1780 = vmatpush1.msra.mxu0 0.0
        %1781 = vmatprep.subr.mxu0 0.0
        %1782 = vmatpush1.msra.mxu0 0.0
        %1783 = vmatprep.subr.mxu0 0.0
        %1784 = vmatpush1.msra.mxu0 0.0
        %1785 = vmatprep.subr.mxu0 0.0
        %1786 = vmatpush1.msra.mxu0 0.0
        %1787 = vmatprep.subr.mxu0 0.0
        %1788 = vmatpush1.msra.mxu0 0.0
        %1789 = vmatprep.subr.mxu0 0.0
        %1790 = vmatpush1.msra.mxu0 0.0
        %1791 = vmatprep.subr.mxu0 0.0
        %1792 = vmatpush1.msra.mxu0 0.0
        %1793 = vmatprep.subr.mxu0 0.0
        %1794 = vmatpush1.msra.mxu0 0.0
        %1795 = vmatprep.subr.mxu0 0.0
        %1796 = vmatpush1.msra.mxu0 0.0
        %1797 = vmatprep.subr.mxu0 0.0
        %1798 = vmatpush1.msra.mxu0 0.0
        %1799 = vmatprep.subr.mxu0 0.0
        %1800 = vmatpush1.msra.mxu0 0.0
        %1801 = vmatprep.subr.mxu0 0.0
        %1802 = vmatpush1.msra.mxu0 0.0
        %1803 = vmatprep.subr.mxu0 0.0
        %1804 = vmatpush1.msra.mxu0 0.0
        %1805 = vmatprep.subr.mxu0 0.0
        %1806 = vmatpush1.msra.mxu0 0.0
        %1807 = vmatprep.subr.mxu0 0.0
        %1808 = vmatpush1.msra.mxu0 0.0
        %1809 = vmatprep.subr.mxu0 0.0
        %1810 = vmatpush1.msra.mxu0 0.0
        %1811 = vmatprep.subr.mxu0 0.0
        %1812 = vmatpush1.msra.mxu0 0.0
        %1813 = vmatprep.subr.mxu0 0.0
        %1814 = vmatpush1.msra.mxu0 0.0
        %1815 = vmatprep.subr.mxu0 0.0
        %1816 = vmatpush1.msra.mxu0 0.0
        %1817 = vmatprep.subr.mxu0 0.0
        %1818 = vmatpush1.msra.mxu0 0.0
        %1819 = vmatprep.mubr.f32.mxu0 0.0
        %1820 = vmatmul.mubr.f32.gmra.mrb[0].mxu0 %v221
        %v1821 = vpop.f32.mrb[0].mxu0
        %v1822 = vadd.f32 0.0, %v1821
        %v1823 = vpop.f32.mrb[0].mxu0
        %1824 = vmatprep.mubr.f32.mxu0 0.0
        %1825 = vmatmul.mubr.f32.gmra.mrb[0].mxu0 %v224
        %v1826 = vpop.f32.mrb[0].mxu0
        %v1827 = vadd.f32 0.0, %v1826
        %v1828 = vpop.f32.mrb[0].mxu0
        %1829 = vmatprep.mubr.f32.mxu0 0.0
        %1830 = vmatmul.mubr.f32.gmra.mrb[0].mxu0 %v227
        %v1831 = vpop.f32.mrb[0].mxu0
        %v1832 = vadd.f32 0.0, %v1831
        %v1833 = vpop.f32.mrb[0].mxu0
        %1834 = vmatprep.mubr.f32.mxu0 0.0
        %1835 = vmatmul.mubr.f32.gmra.mrb[0].mxu0 %v230
        %v1836 = vpop.f32.mrb[0].mxu0
        %v1837 = vadd.f32 0.0, %v1836
        %v1838 = vpop.f32.mrb[0].mxu0
        %1839 = vmatprep.mubr.f32.mxu0 0.0
        %1840 = vmatmul.mubr.f32.gmra.mrb[0].mxu0 %v233
        %v1841 = vpop.f32.mrb[0].mxu0
        %v1842 = vadd.f32 0.0, %v1841
        %v1843 = vpop.f32.mrb[0].mxu0
        %1844 = vmatprep.mubr.f32.mxu0 0.0
        %1845 = vmatmul.mubr.f32.gmra.mrb[0].mxu0 %v236
        %v1846 = vpop.f32.mrb[0].mxu0
        %v1847 = vadd.f32 0.0, %v1846
        %v1848 = vpop.f32.mrb[0].mxu0
        %1849 = vmatprep.mubr.f32.mxu0 0.0
        %1850 = vmatmul.mubr.f32.gmra.mrb[0].mxu0 %v239
        %v1851 = vpop.f32.mrb[0].mxu0
        %v1852 = vadd.f32 0.0, %v1851
        %v1853 = vpop.f32.mrb[0].mxu0
        %1854 = vmatprep.mubr.f32.mxu0 0.0
        %1855 = vmatmul.mubr.f32.gmra.mrb[0].mxu0 %v242
        %v1856 = vpop.f32.mrb[0].mxu0
        %v1857 = vadd.f32 0.0, %v1856
        %v1858 = vpop.f32.mrb[0].mxu0
        %1859 = vdwg.mxu0
        %1860 = vmax.xlane.f32.xlu0 %v1822
        %v1861 = vpop.xlane.xlu0 %1860
        %1862 = vmax.xlane.f32.xlu0 %v1827
        %v1863 = vpop.xlane.xlu0 %1862
        %1864 = vmax.xlane.f32.xlu0 %v1832
        %v1865 = vpop.xlane.xlu0 %1864
        %1866 = vmax.xlane.f32.xlu0 %v1837
        %v1867 = vpop.xlane.xlu0 %1866
        %1868 = vmax.xlane.f32.xlu0 %v1842
        %v1869 = vpop.xlane.xlu0 %1868
        %1870 = vmax.xlane.f32.xlu0 %v1847
        %v1871 = vpop.xlane.xlu0 %1870
        %1872 = vmax.xlane.f32.xlu0 %v1852
        %v1873 = vpop.xlane.xlu0 %1872
        %1874 = vmax.xlane.f32.xlu0 %v1857
        %v1875 = vpop.xlane.xlu0 %1874
        %v1876 = vadd.f32 %v1861, 0.0
        %v1877 = vadd.f32 %v1863, 0.0
        %v1878 = vadd.f32 %v1865, 0.0
        %v1879 = vadd.f32 %v1867, 0.0
        %v1880 = vadd.f32 %v1869, 0.0
        %v1881 = vadd.f32 %v1871, 0.0
        %v1882 = vadd.f32 %v1873, 0.0
        %v1883 = vadd.f32 %v1875, 0.0
        %vm1884 = vcmp.eq.f32.partialorder %v1822, %v1861
        %vm1885 = vcmp.eq.f32.partialorder %v1827, %v1863
        %vm1886 = vcmp.eq.f32.partialorder %v1832, %v1865
        %vm1887 = vcmp.eq.f32.partialorder %v1837, %v1867
        %vm1888 = vcmp.eq.f32.partialorder %v1842, %v1869
        %vm1889 = vcmp.eq.f32.partialorder %v1847, %v1871
        %vm1890 = vcmp.eq.f32.partialorder %v1852, %v1873
        %vm1891 = vcmp.eq.f32.partialorder %v1857, %v1875
        %v1892 = vsel %vm1884, %v350, 128
        %v1893 = vsel %vm1885, %v350, 128
        %v1894 = vsel %vm1886, %v350, 128
        %v1895 = vsel %vm1887, %v350, 128
        %v1896 = vsel %vm1888, %v350, 128
        %v1897 = vsel %vm1889, %v350, 128
        %v1898 = vsel %vm1890, %v350, 128
        %v1899 = vsel %vm1891, %v350, 128
        %v1900 = vand.u32 %v1892, 65535
        %v1901 = vshra.s32 %v1892, 16
        %v1902 = vcvt.s32.f32 %v1900
        %v1903 = vcvt.s32.f32 %v1901
        %1904 = vmin.xlane.f32.xlu0 %v1903
        %v1905 = vpop.xlane.xlu0 %1904
        %vm1906 = vcmp.eq.f32.partialorder %v1903, %v1905
        %v1907 = vsel %vm1906, %v1902, inf
        %1908 = vmin.xlane.f32.xlu0 %v1907
        %v1909 = vpop.xlane.xlu0 %1908
        %v1910 = vcvt.f32.s32 %v1909
        %v1911 = vcvt.f32.s32 %v1905
        %v1912 = vshll.u32 %v1911, 16
        %v1913 = vadd.s32 %v1912, %v1910
        %v1914 = vand.u32 %v1893, 65535
        %v1915 = vshra.s32 %v1893, 16
        %v1916 = vcvt.s32.f32 %v1914
        %v1917 = vcvt.s32.f32 %v1915
        %1918 = vmin.xlane.f32.xlu0 %v1917
        %v1919 = vpop.xlane.xlu0 %1918
        %vm1920 = vcmp.eq.f32.partialorder %v1917, %v1919
        %v1921 = vsel %vm1920, %v1916, inf
        %1922 = vmin.xlane.f32.xlu0 %v1921
        %v1923 = vpop.xlane.xlu0 %1922
        %v1924 = vcvt.f32.s32 %v1923
        %v1925 = vcvt.f32.s32 %v1919
        %v1926 = vshll.u32 %v1925, 16
        %v1927 = vadd.s32 %v1926, %v1924
        %v1928 = vand.u32 %v1894, 65535
        %v1929 = vshra.s32 %v1894, 16
        %v1930 = vcvt.s32.f32 %v1928
        %v1931 = vcvt.s32.f32 %v1929
        %1932 = vmin.xlane.f32.xlu0 %v1931
        %v1933 = vpop.xlane.xlu0 %1932
        %vm1934 = vcmp.eq.f32.partialorder %v1931, %v1933
        %v1935 = vsel %vm1934, %v1930, inf
        %1936 = vmin.xlane.f32.xlu0 %v1935
        %v1937 = vpop.xlane.xlu0 %1936
        %v1938 = vcvt.f32.s32 %v1937
        %v1939 = vcvt.f32.s32 %v1933
        %v1940 = vshll.u32 %v1939, 16
        %v1941 = vadd.s32 %v1940, %v1938
        %v1942 = vand.u32 %v1895, 65535
        %v1943 = vshra.s32 %v1895, 16
        %v1944 = vcvt.s32.f32 %v1942
        %v1945 = vcvt.s32.f32 %v1943
        %1946 = vmin.xlane.f32.xlu0 %v1945
        %v1947 = vpop.xlane.xlu0 %1946
        %vm1948 = vcmp.eq.f32.partialorder %v1945, %v1947
        %v1949 = vsel %vm1948, %v1944, inf
        %1950 = vmin.xlane.f32.xlu0 %v1949
        %v1951 = vpop.xlane.xlu0 %1950
        %v1952 = vcvt.f32.s32 %v1951
        %v1953 = vcvt.f32.s32 %v1947
        %v1954 = vshll.u32 %v1953, 16
        %v1955 = vadd.s32 %v1954, %v1952
        %v1956 = vand.u32 %v1896, 65535
        %v1957 = vshra.s32 %v1896, 16
        %v1958 = vcvt.s32.f32 %v1956
        %v1959 = vcvt.s32.f32 %v1957
        %1960 = vmin.xlane.f32.xlu0 %v1959
        %v1961 = vpop.xlane.xlu0 %1960
        %vm1962 = vcmp.eq.f32.partialorder %v1959, %v1961
        %v1963 = vsel %vm1962, %v1958, inf
        %1964 = vmin.xlane.f32.xlu0 %v1963
        %v1965 = vpop.xlane.xlu0 %1964
        %v1966 = vcvt.f32.s32 %v1965
        %v1967 = vcvt.f32.s32 %v1961
        %v1968 = vshll.u32 %v1967, 16
        %v1969 = vadd.s32 %v1968, %v1966
        %v1970 = vand.u32 %v1897, 65535
        %v1971 = vshra.s32 %v1897, 16
        %v1972 = vcvt.s32.f32 %v1970
        %v1973 = vcvt.s32.f32 %v1971
        %1974 = vmin.xlane.f32.xlu0 %v1973
        %v1975 = vpop.xlane.xlu0 %1974
        %vm1976 = vcmp.eq.f32.partialorder %v1973, %v1975
        %v1977 = vsel %vm1976, %v1972, inf
        %1978 = vmin.xlane.f32.xlu0 %v1977
        %v1979 = vpop.xlane.xlu0 %1978
        %v1980 = vcvt.f32.s32 %v1979
        %v1981 = vcvt.f32.s32 %v1975
        %v1982 = vshll.u32 %v1981, 16
        %v1983 = vadd.s32 %v1982, %v1980
        %v1984 = vand.u32 %v1898, 65535
        %v1985 = vshra.s32 %v1898, 16
        %v1986 = vcvt.s32.f32 %v1984
        %v1987 = vcvt.s32.f32 %v1985
        %1988 = vmin.xlane.f32.xlu0 %v1987
        %v1989 = vpop.xlane.xlu0 %1988
        %vm1990 = vcmp.eq.f32.partialorder %v1987, %v1989
        %v1991 = vsel %vm1990, %v1986, inf
        %1992 = vmin.xlane.f32.xlu0 %v1991
        %v1993 = vpop.xlane.xlu0 %1992
        %v1994 = vcvt.f32.s32 %v1993
        %v1995 = vcvt.f32.s32 %v1989
        %v1996 = vshll.u32 %v1995, 16
        %v1997 = vadd.s32 %v1996, %v1994
        %v1998 = vand.u32 %v1899, 65535
        %v1999 = vshra.s32 %v1899, 16
        %v2000 = vcvt.s32.f32 %v1998
        %v2001 = vcvt.s32.f32 %v1999
        %2002 = vmin.xlane.f32.xlu0 %v2001
        %v2003 = vpop.xlane.xlu0 %2002
        %vm2004 = vcmp.eq.f32.partialorder %v2001, %v2003
        %v2005 = vsel %vm2004, %v2000, inf
        %2006 = vmin.xlane.f32.xlu0 %v2005
        %v2007 = vpop.xlane.xlu0 %2006
        %v2008 = vcvt.f32.s32 %v2007
        %v2009 = vcvt.f32.s32 %v2003
        %v2010 = vshll.u32 %v2009, 16
        %v2011 = vadd.s32 %v2010, %v2008
        %vm2012 = vcmp.eq.s32.totalorder %v350, %v1913
        %vm2013 = vcmp.eq.s32.totalorder %v350, %v1927
        %vm2014 = vcmp.eq.s32.totalorder %v350, %v1941
        %vm2015 = vcmp.eq.s32.totalorder %v350, %v1955
        %vm2016 = vcmp.eq.s32.totalorder %v350, %v1969
        %vm2017 = vcmp.eq.s32.totalorder %v350, %v1983
        %vm2018 = vcmp.eq.s32.totalorder %v350, %v1997
        %vm2019 = vcmp.eq.s32.totalorder %v350, %v2011
        %v2020 = vsel %vm2012, -inf, %v1822
        %v2021 = vsel %vm2013, -inf, %v1827
        %v2022 = vsel %vm2014, -inf, %v1832
        %v2023 = vsel %vm2015, -inf, %v1837
        %v2024 = vsel %vm2016, -inf, %v1842
        %v2025 = vsel %vm2017, -inf, %v1847
        %v2026 = vsel %vm2018, -inf, %v1852
        %v2027 = vsel %vm2019, -inf, %v1857
        %2028 = vmax.xlane.f32.xlu0 %v2020
        %v2029 = vpop.xlane.xlu0 %2028
        %2030 = vmax.xlane.f32.xlu0 %v2021
        %v2031 = vpop.xlane.xlu0 %2030
        %2032 = vmax.xlane.f32.xlu0 %v2022
        %v2033 = vpop.xlane.xlu0 %2032
        %2034 = vmax.xlane.f32.xlu0 %v2023
        %v2035 = vpop.xlane.xlu0 %2034
        %2036 = vmax.xlane.f32.xlu0 %v2024
        %v2037 = vpop.xlane.xlu0 %2036
        %2038 = vmax.xlane.f32.xlu0 %v2025
        %v2039 = vpop.xlane.xlu0 %2038
        %2040 = vmax.xlane.f32.xlu0 %v2026
        %v2041 = vpop.xlane.xlu0 %2040
        %2042 = vmax.xlane.f32.xlu0 %v2027
        %v2043 = vpop.xlane.xlu0 %2042
        %v2044 = vadd.f32 %v1876, %v2029
        %v2045 = vadd.f32 %v1877, %v2031
        %v2046 = vadd.f32 %v1878, %v2033
        %v2047 = vadd.f32 %v1879, %v2035
        %v2048 = vadd.f32 %v1880, %v2037
        %v2049 = vadd.f32 %v1881, %v2039
        %v2050 = vadd.f32 %v1882, %v2041
        %v2051 = vadd.f32 %v1883, %v2043
        %vm2052 = vcmp.eq.f32.partialorder %v2020, %v2029
        %vm2053 = vcmp.eq.f32.partialorder %v2021, %v2031
        %vm2054 = vcmp.eq.f32.partialorder %v2022, %v2033
        %vm2055 = vcmp.eq.f32.partialorder %v2023, %v2035
        %vm2056 = vcmp.eq.f32.partialorder %v2024, %v2037
        %vm2057 = vcmp.eq.f32.partialorder %v2025, %v2039
        %vm2058 = vcmp.eq.f32.partialorder %v2026, %v2041
        %vm2059 = vcmp.eq.f32.partialorder %v2027, %v2043
        %v2060 = vsel %vm2052, %v350, 128
        %v2061 = vsel %vm2053, %v350, 128
        %v2062 = vsel %vm2054, %v350, 128
        %v2063 = vsel %vm2055, %v350, 128
        %v2064 = vsel %vm2056, %v350, 128
        %v2065 = vsel %vm2057, %v350, 128
        %v2066 = vsel %vm2058, %v350, 128
        %v2067 = vsel %vm2059, %v350, 128
        %v2068 = vand.u32 %v2060, 65535
        %v2069 = vshra.s32 %v2060, 16
        %v2070 = vcvt.s32.f32 %v2068
        %v2071 = vcvt.s32.f32 %v2069
        %2072 = vmin.xlane.f32.xlu0 %v2071
        %v2073 = vpop.xlane.xlu0 %2072
        %vm2074 = vcmp.eq.f32.partialorder %v2071, %v2073
        %v2075 = vsel %vm2074, %v2070, inf
        %2076 = vmin.xlane.f32.xlu0 %v2075
        %v2077 = vpop.xlane.xlu0 %2076
        %v2078 = vcvt.f32.s32 %v2077
        %v2079 = vcvt.f32.s32 %v2073
        %v2080 = vshll.u32 %v2079, 16
        %v2081 = vadd.s32 %v2080, %v2078
        %v2082 = vand.u32 %v2061, 65535
        %v2083 = vshra.s32 %v2061, 16
        %v2084 = vcvt.s32.f32 %v2082
        %v2085 = vcvt.s32.f32 %v2083
        %2086 = vmin.xlane.f32.xlu0 %v2085
        %v2087 = vpop.xlane.xlu0 %2086
        %vm2088 = vcmp.eq.f32.partialorder %v2085, %v2087
        %v2089 = vsel %vm2088, %v2084, inf
        %2090 = vmin.xlane.f32.xlu0 %v2089
        %v2091 = vpop.xlane.xlu0 %2090
        %v2092 = vcvt.f32.s32 %v2091
        %v2093 = vcvt.f32.s32 %v2087
        %v2094 = vshll.u32 %v2093, 16
        %v2095 = vadd.s32 %v2094, %v2092
        %v2096 = vand.u32 %v2062, 65535
        %v2097 = vshra.s32 %v2062, 16
        %v2098 = vcvt.s32.f32 %v2096
        %v2099 = vcvt.s32.f32 %v2097
        %2100 = vmin.xlane.f32.xlu0 %v2099
        %v2101 = vpop.xlane.xlu0 %2100
        %vm2102 = vcmp.eq.f32.partialorder %v2099, %v2101
        %v2103 = vsel %vm2102, %v2098, inf
        %2104 = vmin.xlane.f32.xlu0 %v2103
        %v2105 = vpop.xlane.xlu0 %2104
        %v2106 = vcvt.f32.s32 %v2105
        %v2107 = vcvt.f32.s32 %v2101
        %v2108 = vshll.u32 %v2107, 16
        %v2109 = vadd.s32 %v2108, %v2106
        %v2110 = vand.u32 %v2063, 65535
        %v2111 = vshra.s32 %v2063, 16
        %v2112 = vcvt.s32.f32 %v2110
        %v2113 = vcvt.s32.f32 %v2111
        %2114 = vmin.xlane.f32.xlu0 %v2113
        %v2115 = vpop.xlane.xlu0 %2114
        %vm2116 = vcmp.eq.f32.partialorder %v2113, %v2115
        %v2117 = vsel %vm2116, %v2112, inf
        %2118 = vmin.xlane.f32.xlu0 %v2117
        %v2119 = vpop.xlane.xlu0 %2118
        %v2120 = vcvt.f32.s32 %v2119
        %v2121 = vcvt.f32.s32 %v2115
        %v2122 = vshll.u32 %v2121, 16
        %v2123 = vadd.s32 %v2122, %v2120
        %v2124 = vand.u32 %v2064, 65535
        %v2125 = vshra.s32 %v2064, 16
        %v2126 = vcvt.s32.f32 %v2124
        %v2127 = vcvt.s32.f32 %v2125
        %2128 = vmin.xlane.f32.xlu0 %v2127
        %v2129 = vpop.xlane.xlu0 %2128
        %vm2130 = vcmp.eq.f32.partialorder %v2127, %v2129
        %v2131 = vsel %vm2130, %v2126, inf
        %2132 = vmin.xlane.f32.xlu0 %v2131
        %v2133 = vpop.xlane.xlu0 %2132
        %v2134 = vcvt.f32.s32 %v2133
        %v2135 = vcvt.f32.s32 %v2129
        %v2136 = vshll.u32 %v2135, 16
        %v2137 = vadd.s32 %v2136, %v2134
        %v2138 = vand.u32 %v2065, 65535
        %v2139 = vshra.s32 %v2065, 16
        %v2140 = vcvt.s32.f32 %v2138
        %v2141 = vcvt.s32.f32 %v2139
        %2142 = vmin.xlane.f32.xlu0 %v2141
        %v2143 = vpop.xlane.xlu0 %2142
        %vm2144 = vcmp.eq.f32.partialorder %v2141, %v2143
        %v2145 = vsel %vm2144, %v2140, inf
        %2146 = vmin.xlane.f32.xlu0 %v2145
        %v2147 = vpop.xlane.xlu0 %2146
        %v2148 = vcvt.f32.s32 %v2147
        %v2149 = vcvt.f32.s32 %v2143
        %v2150 = vshll.u32 %v2149, 16
        %v2151 = vadd.s32 %v2150, %v2148
        %v2152 = vand.u32 %v2066, 65535
        %v2153 = vshra.s32 %v2066, 16
        %v2154 = vcvt.s32.f32 %v2152
        %v2155 = vcvt.s32.f32 %v2153
        %2156 = vmin.xlane.f32.xlu0 %v2155
        %v2157 = vpop.xlane.xlu0 %2156
        %vm2158 = vcmp.eq.f32.partialorder %v2155, %v2157
        %v2159 = vsel %vm2158, %v2154, inf
        %2160 = vmin.xlane.f32.xlu0 %v2159
        %v2161 = vpop.xlane.xlu0 %2160
        %v2162 = vcvt.f32.s32 %v2161
        %v2163 = vcvt.f32.s32 %v2157
        %v2164 = vshll.u32 %v2163, 16
        %v2165 = vadd.s32 %v2164, %v2162
        %v2166 = vand.u32 %v2067, 65535
        %v2167 = vshra.s32 %v2067, 16
        %v2168 = vcvt.s32.f32 %v2166
        %v2169 = vcvt.s32.f32 %v2167
        %2170 = vmin.xlane.f32.xlu0 %v2169
        %v2171 = vpop.xlane.xlu0 %2170
        %vm2172 = vcmp.eq.f32.partialorder %v2169, %v2171
        %v2173 = vsel %vm2172, %v2168, inf
        %2174 = vmin.xlane.f32.xlu0 %v2173
        %v2175 = vpop.xlane.xlu0 %2174
        %v2176 = vcvt.f32.s32 %v2175
        %v2177 = vcvt.f32.s32 %v2171
        %v2178 = vshll.u32 %v2177, 16
        %v2179 = vadd.s32 %v2178, %v2176
        %vm2180 = vcmp.eq.s32.totalorder %v350, %v2081
        %vm2181 = vcmp.eq.s32.totalorder %v350, %v2095
        %vm2182 = vcmp.eq.s32.totalorder %v350, %v2109
        %vm2183 = vcmp.eq.s32.totalorder %v350, %v2123
        %vm2184 = vcmp.eq.s32.totalorder %v350, %v2137
        %vm2185 = vcmp.eq.s32.totalorder %v350, %v2151
        %vm2186 = vcmp.eq.s32.totalorder %v350, %v2165
        %vm2187 = vcmp.eq.s32.totalorder %v350, %v2179
        %v2188 = vsel %vm2180, -inf, %v2020
        %v2189 = vsel %vm2181, -inf, %v2021
        %v2190 = vsel %vm2182, -inf, %v2022
        %v2191 = vsel %vm2183, -inf, %v2023
        %v2192 = vsel %vm2184, -inf, %v2024
        %v2193 = vsel %vm2185, -inf, %v2025
        %v2194 = vsel %vm2186, -inf, %v2026
        %v2195 = vsel %vm2187, -inf, %v2027
        %2196 = vmax.xlane.f32.xlu0 %v2188
        %v2197 = vpop.xlane.xlu0 %2196
        %2198 = vmax.xlane.f32.xlu0 %v2189
        %v2199 = vpop.xlane.xlu0 %2198
        %2200 = vmax.xlane.f32.xlu0 %v2190
        %v2201 = vpop.xlane.xlu0 %2200
        %2202 = vmax.xlane.f32.xlu0 %v2191
        %v2203 = vpop.xlane.xlu0 %2202
        %2204 = vmax.xlane.f32.xlu0 %v2192
        %v2205 = vpop.xlane.xlu0 %2204
        %2206 = vmax.xlane.f32.xlu0 %v2193
        %v2207 = vpop.xlane.xlu0 %2206
        %2208 = vmax.xlane.f32.xlu0 %v2194
        %v2209 = vpop.xlane.xlu0 %2208
        %2210 = vmax.xlane.f32.xlu0 %v2195
        %v2211 = vpop.xlane.xlu0 %2210
        %v2212 = vadd.f32 %v2044, %v2197
        %v2213 = vadd.f32 %v2045, %v2199
        %v2214 = vadd.f32 %v2046, %v2201
        %v2215 = vadd.f32 %v2047, %v2203
        %v2216 = vadd.f32 %v2048, %v2205
        %v2217 = vadd.f32 %v2049, %v2207
        %v2218 = vadd.f32 %v2050, %v2209
        %v2219 = vadd.f32 %v2051, %v2211
        %v2220 = vadd.f32 %v2212, %v2213
        %v2221 = vadd.f32 %v2220, %v2214
        %v2222 = vadd.f32 %v2221, %v2215
        %v2223 = vadd.f32 %v2222, %v2216
        %v2224 = vadd.f32 %v2223, %v2217
        %v2225 = vadd.f32 %v2224, %v2218
        %v2226 = vadd.f32 %v2225, %v2219
        %v2227 = vrot.slane %v2226, 4
        %v2228 = vadd.f32 %v2226, %v2227
        %v2229 = vrot.slane %v2228, 2
        %v2230 = vadd.f32 %v2228, %v2229
        %v2231 = vrot.slane %v2230, 1
        %v2232 = vadd.f32 %v2230, %v2231
        %vm2233 = vcmask 24600
        %2234 = vst.msk [vmem:[%s135] sm:$0x1] %vm2233, %v2232
        %s2235 = sand.u32 %s71, 1
        %s2236 = scalar_lea.sflag [#allocation3], %s2235
        %s2237 = sand.u32 %s71, 1
        %s2238 = scalar_lea.vmem [#allocation2], %s2237
        // Predicated region
        $region29: #{tpu_custom_call.1} parent=27 // pred_check
          %p2239 = pneg %p81
        $region30: #{tpu_custom_call.1} parent=27 // pred_check_branch
          %2241 = sbr.rel (%p2239) target = $region32
        $region31: #{tpu_custom_call.1} parent=27 // pred_region
          %s2243 = ssub.s32 16, 16
          %2244 = vsyncadd %s2236, %s2243
          %s2245 = smul.addr %s16, 16
          %s2246 = scalar_lea.hbm %s2, %s2245
          %s2248 = sshll.u32 %s2238, 4
          %s2249 = int_to_ptr.vmem [resolvable:$true] %s2248
          %2251 = dma.vmem_to_hbm [thread:$0]  %s2249, 16, %s2246, %s2236
        $region32: #{tpu_custom_call.1} parent=27 // pred_fallthru
          _
      $region28: #{tpu_custom_call.1} parent=5 // pred_fallthru
        _
      %p2252 = scmp.le.s32.totalorder 2, %s11
      // Predicated region
      $region33: #{tpu_custom_call.1} parent=5 // pred_check
        %p2253 = pneg %p2252
      $region34: #{tpu_custom_call.1} parent=5 // pred_check_branch
        %2255 = sbr.rel (%p2253) target = $region36
      $region35: #{tpu_custom_call.1} parent=5 // pred_region
        %s2256 = ssub.s32 %s11, 2
        // Predicated region
        $region37: #{tpu_custom_call.1} parent=35 // pred_check
          %p2257 = pneg %p87
        $region38: #{tpu_custom_call.1} parent=35 // pred_check_branch
          %2259 = sbr.rel (%p2257) target = $region40
        $region39: #{tpu_custom_call.1} parent=35 // pred_region
          %s2260 = sand.u32 %s72, 1
          %s2261 = scalar_lea.sflag [#allocation3], %s2260
          %s2262 = sand.u32 %s72, 1
          %s2263 = scalar_lea.vmem [#allocation2], %s2262
          %2264 = dma.done %s2261, 16
        $region40: #{tpu_custom_call.1} parent=35 // pred_fallthru
          _
      $region36: #{tpu_custom_call.1} parent=5 // pred_fallthru
        _
    $region6: #{tpu_custom_call.1} parent=1 // loop_footer
      %s15 = sadd.s32 1, %s11
    $region7: #{tpu_custom_call.1} parent=1 // loop_footer_branch
      %10 = sbr.rel target = $region3
    $region8: #{tpu_custom_call.1} parent=1 // loop_exit
      _
    %2265 = vsyncpa [#allocation3], 1
    %s2266 = scalar_lea.sflag [#allocation3], 1
    %2267 = vsyncpa %s2266, 1

</llo_original>
